<compile_context>
chip_gen: v5e
topology: v5e:2x2
jax: 0.10.0
libtpu: 0.0.40
codegen_flags: <defaults>
</compile_context>

<pallas_src>
import math
import functools

import jax
import jax.numpy as jnp
from jax.experimental import pallas as pl
from jax.experimental.pallas import tpu as pltpu

# ---------------------------------------------------------------------------
# Small synthetic RoBERTa config (num_labels = 2, dropout = 0)
# ---------------------------------------------------------------------------
VOCAB = 100
VOCAB_PAD = 104        # VOCAB rounded up to a sublane multiple for the one-hot gather
MAX_POS = 32
HIDDEN = 32            # emb_size
NUM_LAYERS = 2
NUM_HEADS = 4
HEAD_DIM = HIDDEN // NUM_HEADS
INTERMEDIATE = 64
NUM_LABELS = 2
LN_EPS = 1e-5
PAD_TOKEN_ID = 1       # RoBERTa padding_idx
BATCH = 2
SEQ = 8
LANE_PAD = 128         # lane-dense classifier output width

# ---------------------------------------------------------------------------
# Packed-slab row layout (all offsets static; sliced with static indices)
# ---------------------------------------------------------------------------
# bf16 weight slab: per layer [wqkv(32 rows) | wo(32) | wi(32) | wo2(64)], then
# classifier dense + out_proj.
L_W_ROWS = 5 * HIDDEN                       # 160 rows per layer
WQKV_OFF, WO_OFF, WI_OFF, WO2_OFF = 0, HIDDEN, 2 * HIDDEN, 3 * HIDDEN
CLSD_OFF = NUM_LAYERS * L_W_ROWS            # classifier dense weight
CLSO_OFF = CLSD_OFF + HIDDEN                # classifier out_proj weight (lane-padded)
W_ROWS = CLSO_OFF + HIDDEN

# f32 vector slab: one 128-lane row per small vector.
L_V_ROWS = 8                                # bqkv, bo, ln1_g, ln1_b, bi, bo2, ln2_g, ln2_b
EMB_LN_G_ROW = NUM_LAYERS * L_V_ROWS
EMB_LN_B_ROW = EMB_LN_G_ROW + 1
TYPE_ROW = EMB_LN_G_ROW + 2
CLS_BD_ROW = EMB_LN_G_ROW + 3
CLS_BO_ROW = EMB_LN_G_ROW + 4
VEC_ROWS = EMB_LN_G_ROW + 5


# ---------------------------------------------------------------------------
# Single fused Pallas kernel: embeddings -> encoder layers -> classifier head
# ---------------------------------------------------------------------------
def _fused_roberta_kernel(idx_ref, mask_ref, emb_ref, w_ref, vec_ref, out_ref,
                          *, batch, seq):
    bs = batch * seq
    scale = 1.0 / math.sqrt(HEAD_DIM)

    def vrow(r, width):
        # one packed f32 vector (bias / LN param / type-emb) as a [1, width] slice
        return vec_ref[r:r + 1, 0:width]

    def layer_norm(x, g, b):
        mean = jnp.mean(x, axis=-1, keepdims=True)
        c = x - mean
        var = jnp.mean(c * c, axis=-1, keepdims=True)
        return c * jax.lax.rsqrt(var + LN_EPS) * g + b

    def gelu(y):
        # TODO(synk): HF RoBERTa uses erf-based GELU; tanh approximation kept
        # for guaranteed Mosaic lowering of the transcendental.
        c = math.sqrt(2.0 / math.pi)
        return 0.5 * y * (1.0 + jnp.tanh(c * (y + 0.044715 * y * y * y)))

    def bdot(a, w_bf16):
        # bf16 operands (single MXU pass), f32 accumulate
        return jnp.dot(a.astype(jnp.bfloat16), w_bf16,
                       preferred_element_type=jnp.float32)

    # ---- embeddings: exact one-hot gathers against the VMEM table (f32) ----
    ids = idx_ref[:, 0:1]                                           # [BS, 1] int32
    pos = idx_ref[:, 1:2]                                           # [BS, 1] int32
    word_iota = jax.lax.broadcasted_iota(jnp.int32, (bs, VOCAB_PAD), 1)
    pos_iota = jax.lax.broadcasted_iota(jnp.int32, (bs, MAX_POS), 1)
    onehot_w = (word_iota == ids).astype(jnp.float32)               # [BS, VOCAB_PAD]
    onehot_p = (pos_iota == pos).astype(jnp.float32)                # [BS, MAX_POS]
    emb = (jnp.dot(onehot_w, emb_ref[0:VOCAB_PAD, :],
                   preferred_element_type=jnp.float32)
           + jnp.dot(onehot_p, emb_ref[VOCAB_PAD:VOCAB_PAD + MAX_POS, :],
                     preferred_element_type=jnp.float32)
           + vrow(TYPE_ROW, HIDDEN))                                # [BS, H]
    x = layer_norm(emb, vrow(EMB_LN_G_ROW, HIDDEN), vrow(EMB_LN_B_ROW, HIDDEN))

    # hoisted additive score mask: block-diagonal (cross-batch) + key padding
    mask_add = mask_ref[...]                                        # [BS, BS] f32

    for l in range(NUM_LAYERS):                 # static unroll: weights VMEM-resident
        woff = l * L_W_ROWS
        voff = l * L_V_ROWS
        wqkv = w_ref[woff + WQKV_OFF: woff + WQKV_OFF + HIDDEN, 0:3 * HIDDEN]
        wo = w_ref[woff + WO_OFF: woff + WO_OFF + HIDDEN, 0:HIDDEN]
        wi = w_ref[woff + WI_OFF: woff + WI_OFF + HIDDEN, 0:INTERMEDIATE]
        wo2 = w_ref[woff + WO2_OFF: woff + WO2_OFF + INTERMEDIATE, 0:HIDDEN]

        # ---- fused Q/K/V projection: [BS, H] @ [H, 3H] ----
        qkv = bdot(x, wqkv) + vrow(voff + 0, 3 * HIDDEN)
        q = qkv[:, 0 * HIDDEN:1 * HIDDEN]
        k = qkv[:, 1 * HIDDEN:2 * HIDDEN]
        v = qkv[:, 2 * HIDDEN:3 * HIDDEN]

        # ---- batch-merged per-head attention (block-diag mask), then one
        #      full [BS,H] @ [H,H] output projection ----
        ctxs = []
        for h in range(NUM_HEADS):
            c0 = h * HEAD_DIM
            qh = q[:, c0:c0 + HEAD_DIM].astype(jnp.bfloat16)
            kh = k[:, c0:c0 + HEAD_DIM].astype(jnp.bfloat16)
            vh = v[:, c0:c0 + HEAD_DIM].astype(jnp.bfloat16)
            s = jax.lax.dot_general(qh, kh, (((1,), (1,)), ((), ())),
                                    preferred_element_type=jnp.float32)
            s = s * scale + mask_add                                # [BS, BS]
            s = s - jnp.max(s, axis=-1, keepdims=True)
            p = jnp.exp(s)
            p = p * pl.reciprocal(jnp.sum(p, axis=-1, keepdims=True), approx=True)
            ctxs.append(jnp.dot(p.astype(jnp.bfloat16), vh,
                                preferred_element_type=jnp.float32))  # [BS, D]
        ctx_all = jnp.concatenate(ctxs, axis=1)                     # [BS, H]
        attn_out = bdot(ctx_all, wo) + vrow(voff + 1, HIDDEN)

        # ---- residual + LayerNorm ----
        x = layer_norm(x + attn_out, vrow(voff + 2, HIDDEN), vrow(voff + 3, HIDDEN))

        # ---- feed forward (GELU) + residual + LayerNorm ----
        inter = gelu(bdot(x, wi) + vrow(voff + 4, INTERMEDIATE))
        ffn = bdot(inter, wo2) + vrow(voff + 5, HIDDEN)
        x = layer_norm(x + ffn, vrow(voff + 6, HIDDEN), vrow(voff + 7, HIDDEN))

    # ---- classification head on the <s> token: one-hot row-selection matmul ----
    row_i = jax.lax.broadcasted_iota(jnp.int32, (batch, bs), 0)
    col_i = jax.lax.broadcasted_iota(jnp.int32, (batch, bs), 1)
    sel = (col_i == row_i * seq).astype(jnp.float32)                # [B, BS]
    cls = jnp.dot(sel, x, preferred_element_type=jnp.float32)       # [B, H]

    cwd = w_ref[CLSD_OFF:CLSD_OFF + HIDDEN, 0:HIDDEN]
    cwo = w_ref[CLSO_OFF:CLSO_OFF + HIDDEN, :]                      # [H, 128] lane-padded
    hcls = jnp.tanh(bdot(cls, cwd) + vrow(CLS_BD_ROW, HIDDEN))
    logits = bdot(hcls, cwo) + vrow(CLS_BO_ROW, LANE_PAD)
    out_ref[...] = logits.astype(out_ref.dtype)                     # [B, 128] lane-dense


# ---------------------------------------------------------------------------
# Parameters (deterministic synthetic init, HF-style N(0, 0.02)), packed into
# three slabs so the whole model is a handful of VMEM-resident kernel args.
# ---------------------------------------------------------------------------
def init_params(key):
    def dense(k, shape):
        return 0.02 * jax.random.normal(k, shape, dtype=jnp.float32)

    keys = iter(jax.random.split(key, 5 + 6 * NUM_LAYERS))
    nk = lambda: next(keys)

    word_emb = dense(nk(), (VOCAB, HIDDEN))
    pos_emb = dense(nk(), (MAX_POS, HIDDEN))
    type_emb = dense(nk(), (1, HIDDEN))
    cls_w_dense = dense(nk(), (HIDDEN, HIDDEN))
    cls_w_out = dense(nk(), (HIDDEN, NUM_LABELS))

    # f32 embedding-table slab: [word (padded to 104 rows) | pos]
    emb_slab = jnp.zeros((VOCAB_PAD + MAX_POS, HIDDEN), jnp.float32)
    emb_slab = emb_slab.at[:VOCAB, :].set(word_emb)
    emb_slab = emb_slab.at[VOCAB_PAD:VOCAB_PAD + MAX_POS, :].set(pos_emb)

    # bf16 weight slab (128-lane rows, zero padded)
    w_slab = jnp.zeros((W_ROWS, LANE_PAD), jnp.float32)
    for l in range(NUM_LAYERS):
        wq = dense(nk(), (HIDDEN, HIDDEN))
        wk = dense(nk(), (HIDDEN, HIDDEN))
        wv = dense(nk(), (HIDDEN, HIDDEN))
        wqkv = jnp.concatenate([wq, wk, wv], axis=1)                # fused [H, 3H]
        wo = dense(nk(), (HIDDEN, HIDDEN))
        wi = dense(nk(), (HIDDEN, INTERMEDIATE))
        wo2 = dense(nk(), (INTERMEDIATE, HIDDEN))
        off = l * L_W_ROWS
        w_slab = w_slab.at[off + WQKV_OFF:off + WQKV_OFF + HIDDEN, :3 * HIDDEN].set(wqkv)
        w_slab = w_slab.at[off + WO_OFF:off + WO_OFF + HIDDEN, :HIDDEN].set(wo)
        w_slab = w_slab.at[off + WI_OFF:off + WI_OFF + HIDDEN, :INTERMEDIATE].set(wi)
        w_slab = w_slab.at[off + WO2_OFF:off + WO2_OFF + INTERMEDIATE, :HIDDEN].set(wo2)
    w_slab = w_slab.at[CLSD_OFF:CLSD_OFF + HIDDEN, :HIDDEN].set(cls_w_dense)
    w_slab = w_slab.at[CLSO_OFF:CLSO_OFF + HIDDEN, :NUM_LABELS].set(cls_w_out)
    w_slab = w_slab.astype(jnp.bfloat16)

    # f32 vector slab: biases (zero), LN gammas (one), LN betas (zero), type emb
    vec_slab = jnp.zeros((VEC_ROWS, LANE_PAD), jnp.float32)
    for l in range(NUM_LAYERS):
        voff = l * L_V_ROWS
        vec_slab = vec_slab.at[voff + 2, :HIDDEN].set(1.0)          # ln1_g
        vec_slab = vec_slab.at[voff + 6, :HIDDEN].set(1.0)          # ln2_g
    vec_slab = vec_slab.at[EMB_LN_G_ROW, :HIDDEN].set(1.0)
    vec_slab = vec_slab.at[TYPE_ROW, :HIDDEN].set(type_emb[0])

    return {"emb_slab": emb_slab, "w_slab": w_slab, "vec_slab": vec_slab}


# ---------------------------------------------------------------------------
# Forward pass (== RoBERTAClassifier.forward -> logits [B, 2])
# ---------------------------------------------------------------------------
def roberta_forward(params, input_ids, attention_mask):
    B, S = input_ids.shape
    BS = B * S

    # tiny scalar/int prep kept in JAX (RoBERTa position ids need a cumsum)
    tok_mask = (input_ids != PAD_TOKEN_ID).astype(jnp.int32)
    position_ids = jnp.cumsum(tok_mask, axis=1) * tok_mask + PAD_TOKEN_ID
    idx = jnp.stack([input_ids.reshape(BS), position_ids.reshape(BS)],
                    axis=1).astype(jnp.int32)                       # [BS, 2]

    # additive score mask, built once: 0 where same-batch & valid key, -1e9 else
    key_valid = attention_mask.astype(jnp.float32).reshape(1, BS)
    same_batch = (jnp.arange(BS)[:, None] // S
                  == jnp.arange(BS)[None, :] // S).astype(jnp.float32)
    mask_add = (same_batch * key_valid - 1.0) * 1e9                 # [BS, BS]

    vmem_spec = pl.BlockSpec(memory_space=pltpu.MemorySpace.VMEM)
    # Single fused grid-less dispatch: ~130 KB of weights + activations, all
    # VMEM-resident on v5e/v6e/v7x. A batch-parallel grid for v7x's second TC
    # only pays once batch grows to hundreds of rows per core.
    logits_padded = pl.pallas_call(
        functools.partial(_fused_roberta_kernel, batch=B, seq=S),
        out_shape=jax.ShapeDtypeStruct((B, LANE_PAD), jnp.float32),
        in_specs=[vmem_spec] * 5,
        out_specs=vmem_spec,
    )(idx, mask_add, params["emb_slab"], params["w_slab"], params["vec_slab"])

    return logits_padded[:, :NUM_LABELS]   # forward() returns y_hat[0] == logits, [B, 2]


if __name__ == "__main__":
    key = jax.random.PRNGKey(0)
    pkey, ikey = jax.random.split(key)
    params = init_params(pkey)

    input_ids = jax.random.randint(ikey, (BATCH, SEQ), minval=3, maxval=VOCAB,
                                   dtype=jnp.int32)
    attention_mask = jnp.ones((BATCH, SEQ), dtype=jnp.int32)
    # pad the tail of the second example to exercise the attention mask path
    attention_mask = attention_mask.at[1, SEQ - 3:].set(0)
    input_ids = input_ids.at[1, SEQ - 3:].set(PAD_TOKEN_ID)

    fwd = jax.jit(roberta_forward)
    logits = fwd(params, input_ids, attention_mask)
    jax.block_until_ready(logits)
    assert logits.shape == (BATCH, NUM_LABELS)
    assert bool(jnp.all(jnp.isfinite(logits)))
    print("KERNEL_OK")
</pallas_src>

<mosaic_0001>
module attributes {stable_mosaic.version = 11 : i64} {
  func.func @_fused_roberta_kernel(%arg0: memref<16x2xi32, #tpu.memory_space<vmem>>, %arg1: memref<16x16xf32, #tpu.memory_space<vmem>>, %arg2: memref<136x32xf32, #tpu.memory_space<vmem>>, %arg3: memref<384x128xbf16, #tpu.memory_space<vmem>>, %arg4: memref<21x128xf32, #tpu.memory_space<vmem>>, %arg5: memref<2x128xf32, #tpu.memory_space<vmem>>) attributes {dimension_semantics = [], scalar_prefetch = 0 : i64, scratch_operands = 0 : i64, tpu.core_type = #tpu.core_type<tc>} {
    %c0 = arith.constant 0 : index
    %c0_0 = arith.constant 0 : index
    %0 = vector.load %arg0[%c0, %c0_0] : memref<16x2xi32, #tpu.memory_space<vmem>>, vector<16x1xi32>
    %c0_1 = arith.constant 0 : index
    %c1 = arith.constant 1 : index
    %1 = vector.load %arg0[%c0_1, %c1] : memref<16x2xi32, #tpu.memory_space<vmem>>, vector<16x1xi32>
    %2 = tpu.iota {dimensions = array<i32: 1>} : vector<16x104xi32>
    %3 = tpu.iota {dimensions = array<i32: 1>} : vector<16x32xi32>
    %4 = vector.broadcast %0 : vector<16x1xi32> to vector<16x104xi32>
    %5 = arith.cmpi eq, %2, %4 : vector<16x104xi32>
    %6 = arith.extui %5 : vector<16x104xi1> to vector<16x104xi32>
    %7 = arith.sitofp %6 : vector<16x104xi32> to vector<16x104xf32>
    %8 = vector.broadcast %1 : vector<16x1xi32> to vector<16x32xi32>
    %9 = arith.cmpi eq, %3, %8 : vector<16x32xi32>
    %10 = arith.extui %9 : vector<16x32xi1> to vector<16x32xi32>
    %11 = arith.sitofp %10 : vector<16x32xi32> to vector<16x32xf32>
    %c0_2 = arith.constant 0 : index
    %c0_3 = arith.constant 0 : index
    %12 = vector.load %arg2[%c0_2, %c0_3] : memref<136x32xf32, #tpu.memory_space<vmem>>, vector<104x32xf32>
    %cst = arith.constant dense<0.000000e+00> : vector<16x32xf32>
    %13 = tpu.matmul %7, %12, %cst {dimension_numbers = #tpu.dot_dimension_numbers<[1], [0], [0], [1], [0, 0, 1, 1], [], []>} : vector<16x104xf32>, vector<104x32xf32>, vector<16x32xf32> -> vector<16x32xf32>
    %c104 = arith.constant 104 : index
    %c0_4 = arith.constant 0 : index
    %14 = vector.load %arg2[%c104, %c0_4] : memref<136x32xf32, #tpu.memory_space<vmem>>, vector<32x32xf32>
    %cst_5 = arith.constant dense<0.000000e+00> : vector<16x32xf32>
    %15 = tpu.matmul %11, %14, %cst_5 {dimension_numbers = #tpu.dot_dimension_numbers<[1], [0], [0], [1], [0, 0, 1, 1], [], []>} : vector<16x32xf32>, vector<32x32xf32>, vector<16x32xf32> -> vector<16x32xf32>
    %16 = arith.addf %13, %15 : vector<16x32xf32>
    %c18 = arith.constant 18 : index
    %c0_6 = arith.constant 0 : index
    %17 = vector.load %arg4[%c18, %c0_6] : memref<21x128xf32, #tpu.memory_space<vmem>>, vector<1x32xf32>
    %18 = vector.broadcast %17 : vector<1x32xf32> to vector<16x32xf32>
    %19 = arith.addf %16, %18 : vector<16x32xf32>
    %c16 = arith.constant 16 : index
    %c0_7 = arith.constant 0 : index
    %20 = vector.load %arg4[%c16, %c0_7] : memref<21x128xf32, #tpu.memory_space<vmem>>, vector<1x32xf32>
    %c17 = arith.constant 17 : index
    %c0_8 = arith.constant 0 : index
    %21 = vector.load %arg4[%c17, %c0_8] : memref<21x128xf32, #tpu.memory_space<vmem>>, vector<1x32xf32>
    %cst_9 = arith.constant dense<0.000000e+00> : vector<16xf32>
    %22 = vector.multi_reduction <add>, %19, %cst_9 [1] : vector<16x32xf32> to vector<16xf32>
    %23 = vector.shape_cast %22 : vector<16xf32> to vector<16x1xf32>
    %cst_10 = arith.constant 3.200000e+01 : f32
    %24 = vector.broadcast %cst_10 : f32 to vector<16x1xf32>
    %25 = arith.divf %23, %24 : vector<16x1xf32>
    %26 = vector.broadcast %25 : vector<16x1xf32> to vector<16x32xf32>
    %27 = arith.subf %19, %26 : vector<16x32xf32>
    %28 = arith.mulf %27, %27 : vector<16x32xf32>
    %cst_11 = arith.constant dense<0.000000e+00> : vector<16xf32>
    %29 = vector.multi_reduction <add>, %28, %cst_11 [1] : vector<16x32xf32> to vector<16xf32>
    %30 = vector.shape_cast %29 : vector<16xf32> to vector<16x1xf32>
    %cst_12 = arith.constant 3.200000e+01 : f32
    %31 = vector.broadcast %cst_12 : f32 to vector<16x1xf32>
    %32 = arith.divf %30, %31 : vector<16x1xf32>
    %cst_13 = arith.constant 9.99999974E-6 : f32
    %33 = vector.broadcast %cst_13 : f32 to vector<16x1xf32>
    %34 = arith.addf %32, %33 : vector<16x1xf32>
    %35 = math.rsqrt %34 : vector<16x1xf32>
    %36 = vector.broadcast %35 : vector<16x1xf32> to vector<16x32xf32>
    %37 = arith.mulf %27, %36 : vector<16x32xf32>
    %38 = vector.broadcast %20 : vector<1x32xf32> to vector<16x32xf32>
    %39 = arith.mulf %37, %38 : vector<16x32xf32>
    %40 = vector.broadcast %21 : vector<1x32xf32> to vector<16x32xf32>
    %41 = arith.addf %39, %40 : vector<16x32xf32>
    %c0_14 = arith.constant 0 : index
    %c0_15 = arith.constant 0 : index
    %42 = vector.load %arg1[%c0_14, %c0_15] : memref<16x16xf32, #tpu.memory_space<vmem>>, vector<16x16xf32>
    %c0_16 = arith.constant 0 : index
    %c0_17 = arith.constant 0 : index
    %43 = vector.load %arg3[%c0_16, %c0_17] : memref<384x128xbf16, #tpu.memory_space<vmem>>, vector<32x96xbf16>
    %c32 = arith.constant 32 : index
    %c0_18 = arith.constant 0 : index
    %44 = vector.load %arg3[%c32, %c0_18] : memref<384x128xbf16, #tpu.memory_space<vmem>>, vector<32x32xbf16>
    %c64 = arith.constant 64 : index
    %c0_19 = arith.constant 0 : index
    %45 = vector.load %arg3[%c64, %c0_19] : memref<384x128xbf16, #tpu.memory_space<vmem>>, vector<32x64xbf16>
    %c96 = arith.constant 96 : index
    %c0_20 = arith.constant 0 : index
    %46 = vector.load %arg3[%c96, %c0_20] : memref<384x128xbf16, #tpu.memory_space<vmem>>, vector<64x32xbf16>
    %47 = arith.truncf %41 : vector<16x32xf32> to vector<16x32xbf16>
    %cst_21 = arith.constant dense<0.000000e+00> : vector<16x96xf32>
    %48 = tpu.matmul %47, %43, %cst_21 {dimension_numbers = #tpu.dot_dimension_numbers<[1], [0], [0], [1], [0, 0, 1, 1], [], []>} : vector<16x32xbf16>, vector<32x96xbf16>, vector<16x96xf32> -> vector<16x96xf32>
    %c0_22 = arith.constant 0 : index
    %c0_23 = arith.constant 0 : index
    %49 = vector.load %arg4[%c0_22, %c0_23] : memref<21x128xf32, #tpu.memory_space<vmem>>, vector<1x96xf32>
    %50 = vector.broadcast %49 : vector<1x96xf32> to vector<16x96xf32>
    %51 = arith.addf %48, %50 : vector<16x96xf32>
    %52 = vector.extract_strided_slice %51 {offsets = [0, 0], sizes = [16, 32], strides = [1, 1]} : vector<16x96xf32> to vector<16x32xf32>
    %53 = vector.extract_strided_slice %51 {offsets = [0, 32], sizes = [16, 32], strides = [1, 1]} : vector<16x96xf32> to vector<16x32xf32>
    %54 = vector.extract_strided_slice %51 {offsets = [0, 64], sizes = [16, 32], strides = [1, 1]} : vector<16x96xf32> to vector<16x32xf32>
    %55 = vector.extract_strided_slice %52 {offsets = [0, 0], sizes = [16, 8], strides = [1, 1]} : vector<16x32xf32> to vector<16x8xf32>
    %56 = arith.truncf %55 : vector<16x8xf32> to vector<16x8xbf16>
    %57 = vector.extract_strided_slice %53 {offsets = [0, 0], sizes = [16, 8], strides = [1, 1]} : vector<16x32xf32> to vector<16x8xf32>
    %58 = arith.truncf %57 : vector<16x8xf32> to vector<16x8xbf16>
    %59 = vector.extract_strided_slice %54 {offsets = [0, 0], sizes = [16, 8], strides = [1, 1]} : vector<16x32xf32> to vector<16x8xf32>
    %60 = arith.truncf %59 : vector<16x8xf32> to vector<16x8xbf16>
    %cst_24 = arith.constant dense<0.000000e+00> : vector<16x16xf32>
    %61 = tpu.matmul %56, %58, %cst_24 {dimension_numbers = #tpu.dot_dimension_numbers<[1], [1], [0], [0], [0, 0, 1, 0], [], []>} : vector<16x8xbf16>, vector<16x8xbf16>, vector<16x16xf32> -> vector<16x16xf32>
    %cst_25 = arith.constant 0.353553385 : f32
    %62 = vector.broadcast %cst_25 : f32 to vector<16x16xf32>
    %63 = arith.mulf %61, %62 : vector<16x16xf32>
    %64 = arith.addf %63, %42 : vector<16x16xf32>
    %cst_26 = arith.constant dense<0xFF800000> : vector<16xf32>
    %65 = vector.multi_reduction <maximumf>, %64, %cst_26 [1] : vector<16x16xf32> to vector<16xf32>
    %66 = vector.shape_cast %65 : vector<16xf32> to vector<16x1xf32>
    %67 = vector.broadcast %66 : vector<16x1xf32> to vector<16x16xf32>
    %68 = arith.subf %64, %67 : vector<16x16xf32>
    %69 = math.exp %68 : vector<16x16xf32>
    %cst_27 = arith.constant dense<0.000000e+00> : vector<16xf32>
    %70 = vector.multi_reduction <add>, %69, %cst_27 [1] : vector<16x16xf32> to vector<16xf32>
    %71 = vector.shape_cast %70 : vector<16xf32> to vector<16x1xf32>
    %72 = tpu.reciprocal %71 {approx = true} : vector<16x1xf32> -> vector<16x1xf32>
    %73 = vector.broadcast %72 : vector<16x1xf32> to vector<16x16xf32>
    %74 = arith.mulf %69, %73 : vector<16x16xf32>
    %75 = arith.truncf %74 : vector<16x16xf32> to vector<16x16xbf16>
    %cst_28 = arith.constant dense<0.000000e+00> : vector<16x8xf32>
    %76 = tpu.matmul %75, %60, %cst_28 {dimension_numbers = #tpu.dot_dimension_numbers<[1], [0], [0], [1], [0, 0, 1, 1], [], []>} : vector<16x16xbf16>, vector<16x8xbf16>, vector<16x8xf32> -> vector<16x8xf32>
    %77 = vector.extract_strided_slice %52 {offsets = [0, 8], sizes = [16, 8], strides = [1, 1]} : vector<16x32xf32> to vector<16x8xf32>
    %78 = arith.truncf %77 : vector<16x8xf32> to vector<16x8xbf16>
    %79 = vector.extract_strided_slice %53 {offsets = [0, 8], sizes = [16, 8], strides = [1, 1]} : vector<16x32xf32> to vector<16x8xf32>
    %80 = arith.truncf %79 : vector<16x8xf32> to vector<16x8xbf16>
    %81 = vector.extract_strided_slice %54 {offsets = [0, 8], sizes = [16, 8], strides = [1, 1]} : vector<16x32xf32> to vector<16x8xf32>
    %82 = arith.truncf %81 : vector<16x8xf32> to vector<16x8xbf16>
    %cst_29 = arith.constant dense<0.000000e+00> : vector<16x16xf32>
    %83 = tpu.matmul %78, %80, %cst_29 {dimension_numbers = #tpu.dot_dimension_numbers<[1], [1], [0], [0], [0, 0, 1, 0], [], []>} : vector<16x8xbf16>, vector<16x8xbf16>, vector<16x16xf32> -> vector<16x16xf32>
    %cst_30 = arith.constant 0.353553385 : f32
    %84 = vector.broadcast %cst_30 : f32 to vector<16x16xf32>
    %85 = arith.mulf %83, %84 : vector<16x16xf32>
    %86 = arith.addf %85, %42 : vector<16x16xf32>
    %cst_31 = arith.constant dense<0xFF800000> : vector<16xf32>
    %87 = vector.multi_reduction <maximumf>, %86, %cst_31 [1] : vector<16x16xf32> to vector<16xf32>
    %88 = vector.shape_cast %87 : vector<16xf32> to vector<16x1xf32>
    %89 = vector.broadcast %88 : vector<16x1xf32> to vector<16x16xf32>
    %90 = arith.subf %86, %89 : vector<16x16xf32>
    %91 = math.exp %90 : vector<16x16xf32>
    %cst_32 = arith.constant dense<0.000000e+00> : vector<16xf32>
    %92 = vector.multi_reduction <add>, %91, %cst_32 [1] : vector<16x16xf32> to vector<16xf32>
    %93 = vector.shape_cast %92 : vector<16xf32> to vector<16x1xf32>
    %94 = tpu.reciprocal %93 {approx = true} : vector<16x1xf32> -> vector<16x1xf32>
    %95 = vector.broadcast %94 : vector<16x1xf32> to vector<16x16xf32>
    %96 = arith.mulf %91, %95 : vector<16x16xf32>
    %97 = arith.truncf %96 : vector<16x16xf32> to vector<16x16xbf16>
    %cst_33 = arith.constant dense<0.000000e+00> : vector<16x8xf32>
    %98 = tpu.matmul %97, %82, %cst_33 {dimension_numbers = #tpu.dot_dimension_numbers<[1], [0], [0], [1], [0, 0, 1, 1], [], []>} : vector<16x16xbf16>, vector<16x8xbf16>, vector<16x8xf32> -> vector<16x8xf32>
    %99 = vector.extract_strided_slice %52 {offsets = [0, 16], sizes = [16, 8], strides = [1, 1]} : vector<16x32xf32> to vector<16x8xf32>
    %100 = arith.truncf %99 : vector<16x8xf32> to vector<16x8xbf16>
    %101 = vector.extract_strided_slice %53 {offsets = [0, 16], sizes = [16, 8], strides = [1, 1]} : vector<16x32xf32> to vector<16x8xf32>
    %102 = arith.truncf %101 : vector<16x8xf32> to vector<16x8xbf16>
    %103 = vector.extract_strided_slice %54 {offsets = [0, 16], sizes = [16, 8], strides = [1, 1]} : vector<16x32xf32> to vector<16x8xf32>
    %104 = arith.truncf %103 : vector<16x8xf32> to vector<16x8xbf16>
    %cst_34 = arith.constant dense<0.000000e+00> : vector<16x16xf32>
    %105 = tpu.matmul %100, %102, %cst_34 {dimension_numbers = #tpu.dot_dimension_numbers<[1], [1], [0], [0], [0, 0, 1, 0], [], []>} : vector<16x8xbf16>, vector<16x8xbf16>, vector<16x16xf32> -> vector<16x16xf32>
    %cst_35 = arith.constant 0.353553385 : f32
    %106 = vector.broadcast %cst_35 : f32 to vector<16x16xf32>
    %107 = arith.mulf %105, %106 : vector<16x16xf32>
    %108 = arith.addf %107, %42 : vector<16x16xf32>
    %cst_36 = arith.constant dense<0xFF800000> : vector<16xf32>
    %109 = vector.multi_reduction <maximumf>, %108, %cst_36 [1] : vector<16x16xf32> to vector<16xf32>
    %110 = vector.shape_cast %109 : vector<16xf32> to vector<16x1xf32>
    %111 = vector.broadcast %110 : vector<16x1xf32> to vector<16x16xf32>
    %112 = arith.subf %108, %111 : vector<16x16xf32>
    %113 = math.exp %112 : vector<16x16xf32>
    %cst_37 = arith.constant dense<0.000000e+00> : vector<16xf32>
    %114 = vector.multi_reduction <add>, %113, %cst_37 [1] : vector<16x16xf32> to vector<16xf32>
    %115 = vector.shape_cast %114 : vector<16xf32> to vector<16x1xf32>
    %116 = tpu.reciprocal %115 {approx = true} : vector<16x1xf32> -> vector<16x1xf32>
    %117 = vector.broadcast %116 : vector<16x1xf32> to vector<16x16xf32>
    %118 = arith.mulf %113, %117 : vector<16x16xf32>
    %119 = arith.truncf %118 : vector<16x16xf32> to vector<16x16xbf16>
    %cst_38 = arith.constant dense<0.000000e+00> : vector<16x8xf32>
    %120 = tpu.matmul %119, %104, %cst_38 {dimension_numbers = #tpu.dot_dimension_numbers<[1], [0], [0], [1], [0, 0, 1, 1], [], []>} : vector<16x16xbf16>, vector<16x8xbf16>, vector<16x8xf32> -> vector<16x8xf32>
    %121 = vector.extract_strided_slice %52 {offsets = [0, 24], sizes = [16, 8], strides = [1, 1]} : vector<16x32xf32> to vector<16x8xf32>
    %122 = arith.truncf %121 : vector<16x8xf32> to vector<16x8xbf16>
    %123 = vector.extract_strided_slice %53 {offsets = [0, 24], sizes = [16, 8], strides = [1, 1]} : vector<16x32xf32> to vector<16x8xf32>
    %124 = arith.truncf %123 : vector<16x8xf32> to vector<16x8xbf16>
    %125 = vector.extract_strided_slice %54 {offsets = [0, 24], sizes = [16, 8], strides = [1, 1]} : vector<16x32xf32> to vector<16x8xf32>
    %126 = arith.truncf %125 : vector<16x8xf32> to vector<16x8xbf16>
    %cst_39 = arith.constant dense<0.000000e+00> : vector<16x16xf32>
    %127 = tpu.matmul %122, %124, %cst_39 {dimension_numbers = #tpu.dot_dimension_numbers<[1], [1], [0], [0], [0, 0, 1, 0], [], []>} : vector<16x8xbf16>, vector<16x8xbf16>, vector<16x16xf32> -> vector<16x16xf32>
    %cst_40 = arith.constant 0.353553385 : f32
    %128 = vector.broadcast %cst_40 : f32 to vector<16x16xf32>
    %129 = arith.mulf %127, %128 : vector<16x16xf32>
    %130 = arith.addf %129, %42 : vector<16x16xf32>
    %cst_41 = arith.constant dense<0xFF800000> : vector<16xf32>
    %131 = vector.multi_reduction <maximumf>, %130, %cst_41 [1] : vector<16x16xf32> to vector<16xf32>
    %132 = vector.shape_cast %131 : vector<16xf32> to vector<16x1xf32>
    %133 = vector.broadcast %132 : vector<16x1xf32> to vector<16x16xf32>
    %134 = arith.subf %130, %133 : vector<16x16xf32>
    %135 = math.exp %134 : vector<16x16xf32>
    %cst_42 = arith.constant dense<0.000000e+00> : vector<16xf32>
    %136 = vector.multi_reduction <add>, %135, %cst_42 [1] : vector<16x16xf32> to vector<16xf32>
    %137 = vector.shape_cast %136 : vector<16xf32> to vector<16x1xf32>
    %138 = tpu.reciprocal %137 {approx = true} : vector<16x1xf32> -> vector<16x1xf32>
    %139 = vector.broadcast %138 : vector<16x1xf32> to vector<16x16xf32>
    %140 = arith.mulf %135, %139 : vector<16x16xf32>
    %141 = arith.truncf %140 : vector<16x16xf32> to vector<16x16xbf16>
    %cst_43 = arith.constant dense<0.000000e+00> : vector<16x8xf32>
    %142 = tpu.matmul %141, %126, %cst_43 {dimension_numbers = #tpu.dot_dimension_numbers<[1], [0], [0], [1], [0, 0, 1, 1], [], []>} : vector<16x16xbf16>, vector<16x8xbf16>, vector<16x8xf32> -> vector<16x8xf32>
    %143 = tpu.concatenate %76, %98, %120, %142 in 1 : vector<16x8xf32>, vector<16x8xf32>, vector<16x8xf32>, vector<16x8xf32> -> vector<16x32xf32>
    %144 = arith.truncf %143 : vector<16x32xf32> to vector<16x32xbf16>
    %cst_44 = arith.constant dense<0.000000e+00> : vector<16x32xf32>
    %145 = tpu.matmul %144, %44, %cst_44 {dimension_numbers = #tpu.dot_dimension_numbers<[1], [0], [0], [1], [0, 0, 1, 1], [], []>} : vector<16x32xbf16>, vector<32x32xbf16>, vector<16x32xf32> -> vector<16x32xf32>
    %c1_45 = arith.constant 1 : index
    %c0_46 = arith.constant 0 : index
    %146 = vector.load %arg4[%c1_45, %c0_46] : memref<21x128xf32, #tpu.memory_space<vmem>>, vector<1x32xf32>
    %147 = vector.broadcast %146 : vector<1x32xf32> to vector<16x32xf32>
    %148 = arith.addf %145, %147 : vector<16x32xf32>
    %149 = arith.addf %41, %148 : vector<16x32xf32>
    %c2 = arith.constant 2 : index
    %c0_47 = arith.constant 0 : index
    %150 = vector.load %arg4[%c2, %c0_47] : memref<21x128xf32, #tpu.memory_space<vmem>>, vector<1x32xf32>
    %c3 = arith.constant 3 : index
    %c0_48 = arith.constant 0 : index
    %151 = vector.load %arg4[%c3, %c0_48] : memref<21x128xf32, #tpu.memory_space<vmem>>, vector<1x32xf32>
    %cst_49 = arith.constant dense<0.000000e+00> : vector<16xf32>
    %152 = vector.multi_reduction <add>, %149, %cst_49 [1] : vector<16x32xf32> to vector<16xf32>
    %153 = vector.shape_cast %152 : vector<16xf32> to vector<16x1xf32>
    %cst_50 = arith.constant 3.200000e+01 : f32
    %154 = vector.broadcast %cst_50 : f32 to vector<16x1xf32>
    %155 = arith.divf %153, %154 : vector<16x1xf32>
    %156 = vector.broadcast %155 : vector<16x1xf32> to vector<16x32xf32>
    %157 = arith.subf %149, %156 : vector<16x32xf32>
    %158 = arith.mulf %157, %157 : vector<16x32xf32>
    %cst_51 = arith.constant dense<0.000000e+00> : vector<16xf32>
    %159 = vector.multi_reduction <add>, %158, %cst_51 [1] : vector<16x32xf32> to vector<16xf32>
    %160 = vector.shape_cast %159 : vector<16xf32> to vector<16x1xf32>
    %cst_52 = arith.constant 3.200000e+01 : f32
    %161 = vector.broadcast %cst_52 : f32 to vector<16x1xf32>
    %162 = arith.divf %160, %161 : vector<16x1xf32>
    %cst_53 = arith.constant 9.99999974E-6 : f32
    %163 = vector.broadcast %cst_53 : f32 to vector<16x1xf32>
    %164 = arith.addf %162, %163 : vector<16x1xf32>
    %165 = math.rsqrt %164 : vector<16x1xf32>
    %166 = vector.broadcast %165 : vector<16x1xf32> to vector<16x32xf32>
    %167 = arith.mulf %157, %166 : vector<16x32xf32>
    %168 = vector.broadcast %150 : vector<1x32xf32> to vector<16x32xf32>
    %169 = arith.mulf %167, %168 : vector<16x32xf32>
    %170 = vector.broadcast %151 : vector<1x32xf32> to vector<16x32xf32>
    %171 = arith.addf %169, %170 : vector<16x32xf32>
    %172 = arith.truncf %171 : vector<16x32xf32> to vector<16x32xbf16>
    %cst_54 = arith.constant dense<0.000000e+00> : vector<16x64xf32>
    %173 = tpu.matmul %172, %45, %cst_54 {dimension_numbers = #tpu.dot_dimension_numbers<[1], [0], [0], [1], [0, 0, 1, 1], [], []>} : vector<16x32xbf16>, vector<32x64xbf16>, vector<16x64xf32> -> vector<16x64xf32>
    %c4 = arith.constant 4 : index
    %c0_55 = arith.constant 0 : index
    %174 = vector.load %arg4[%c4, %c0_55] : memref<21x128xf32, #tpu.memory_space<vmem>>, vector<1x64xf32>
    %175 = vector.broadcast %174 : vector<1x64xf32> to vector<16x64xf32>
    %176 = arith.addf %173, %175 : vector<16x64xf32>
    %cst_56 = arith.constant 5.000000e-01 : f32
    %177 = vector.broadcast %cst_56 : f32 to vector<16x64xf32>
    %178 = arith.mulf %177, %176 : vector<16x64xf32>
    %cst_57 = arith.constant 4.471500e-02 : f32
    %179 = vector.broadcast %cst_57 : f32 to vector<16x64xf32>
    %180 = arith.mulf %179, %176 : vector<16x64xf32>
    %181 = arith.mulf %180, %176 : vector<16x64xf32>
    %182 = arith.mulf %181, %176 : vector<16x64xf32>
    %183 = arith.addf %176, %182 : vector<16x64xf32>
    %cst_58 = arith.constant 0.797884583 : f32
    %184 = vector.broadcast %cst_58 : f32 to vector<16x64xf32>
    %185 = arith.mulf %184, %183 : vector<16x64xf32>
    %186 = math.tanh %185 : vector<16x64xf32>
    %cst_59 = arith.constant 1.000000e+00 : f32
    %187 = vector.broadcast %cst_59 : f32 to vector<16x64xf32>
    %188 = arith.addf %187, %186 : vector<16x64xf32>
    %189 = arith.mulf %178, %188 : vector<16x64xf32>
    %190 = arith.truncf %189 : vector<16x64xf32> to vector<16x64xbf16>
    %cst_60 = arith.constant dense<0.000000e+00> : vector<16x32xf32>
    %191 = tpu.matmul %190, %46, %cst_60 {dimension_numbers = #tpu.dot_dimension_numbers<[1], [0], [0], [1], [0, 0, 1, 1], [], []>} : vector<16x64xbf16>, vector<64x32xbf16>, vector<16x32xf32> -> vector<16x32xf32>
    %c5 = arith.constant 5 : index
    %c0_61 = arith.constant 0 : index
    %192 = vector.load %arg4[%c5, %c0_61] : memref<21x128xf32, #tpu.memory_space<vmem>>, vector<1x32xf32>
    %193 = vector.broadcast %192 : vector<1x32xf32> to vector<16x32xf32>
    %194 = arith.addf %191, %193 : vector<16x32xf32>
    %195 = arith.addf %171, %194 : vector<16x32xf32>
    %c6 = arith.constant 6 : index
    %c0_62 = arith.constant 0 : index
    %196 = vector.load %arg4[%c6, %c0_62] : memref<21x128xf32, #tpu.memory_space<vmem>>, vector<1x32xf32>
    %c7 = arith.constant 7 : index
    %c0_63 = arith.constant 0 : index
    %197 = vector.load %arg4[%c7, %c0_63] : memref<21x128xf32, #tpu.memory_space<vmem>>, vector<1x32xf32>
    %cst_64 = arith.constant dense<0.000000e+00> : vector<16xf32>
    %198 = vector.multi_reduction <add>, %195, %cst_64 [1] : vector<16x32xf32> to vector<16xf32>
    %199 = vector.shape_cast %198 : vector<16xf32> to vector<16x1xf32>
    %cst_65 = arith.constant 3.200000e+01 : f32
    %200 = vector.broadcast %cst_65 : f32 to vector<16x1xf32>
    %201 = arith.divf %199, %200 : vector<16x1xf32>
    %202 = vector.broadcast %201 : vector<16x1xf32> to vector<16x32xf32>
    %203 = arith.subf %195, %202 : vector<16x32xf32>
    %204 = arith.mulf %203, %203 : vector<16x32xf32>
    %cst_66 = arith.constant dense<0.000000e+00> : vector<16xf32>
    %205 = vector.multi_reduction <add>, %204, %cst_66 [1] : vector<16x32xf32> to vector<16xf32>
    %206 = vector.shape_cast %205 : vector<16xf32> to vector<16x1xf32>
    %cst_67 = arith.constant 3.200000e+01 : f32
    %207 = vector.broadcast %cst_67 : f32 to vector<16x1xf32>
    %208 = arith.divf %206, %207 : vector<16x1xf32>
    %cst_68 = arith.constant 9.99999974E-6 : f32
    %209 = vector.broadcast %cst_68 : f32 to vector<16x1xf32>
    %210 = arith.addf %208, %209 : vector<16x1xf32>
    %211 = math.rsqrt %210 : vector<16x1xf32>
    %212 = vector.broadcast %211 : vector<16x1xf32> to vector<16x32xf32>
    %213 = arith.mulf %203, %212 : vector<16x32xf32>
    %214 = vector.broadcast %196 : vector<1x32xf32> to vector<16x32xf32>
    %215 = arith.mulf %213, %214 : vector<16x32xf32>
    %216 = vector.broadcast %197 : vector<1x32xf32> to vector<16x32xf32>
    %217 = arith.addf %215, %216 : vector<16x32xf32>
    %c160 = arith.constant 160 : index
    %c0_69 = arith.constant 0 : index
    %218 = vector.load %arg3[%c160, %c0_69] : memref<384x128xbf16, #tpu.memory_space<vmem>>, vector<32x96xbf16>
    %c192 = arith.constant 192 : index
    %c0_70 = arith.constant 0 : index
    %219 = vector.load %arg3[%c192, %c0_70] : memref<384x128xbf16, #tpu.memory_space<vmem>>, vector<32x32xbf16>
    %c224 = arith.constant 224 : index
    %c0_71 = arith.constant 0 : index
    %220 = vector.load %arg3[%c224, %c0_71] : memref<384x128xbf16, #tpu.memory_space<vmem>>, vector<32x64xbf16>
    %c256 = arith.constant 256 : index
    %c0_72 = arith.constant 0 : index
    %221 = vector.load %arg3[%c256, %c0_72] : memref<384x128xbf16, #tpu.memory_space<vmem>>, vector<64x32xbf16>
    %222 = arith.truncf %217 : vector<16x32xf32> to vector<16x32xbf16>
    %cst_73 = arith.constant dense<0.000000e+00> : vector<16x96xf32>
    %223 = tpu.matmul %222, %218, %cst_73 {dimension_numbers = #tpu.dot_dimension_numbers<[1], [0], [0], [1], [0, 0, 1, 1], [], []>} : vector<16x32xbf16>, vector<32x96xbf16>, vector<16x96xf32> -> vector<16x96xf32>
    %c8 = arith.constant 8 : index
    %c0_74 = arith.constant 0 : index
    %224 = vector.load %arg4[%c8, %c0_74] : memref<21x128xf32, #tpu.memory_space<vmem>>, vector<1x96xf32>
    %225 = vector.broadcast %224 : vector<1x96xf32> to vector<16x96xf32>
    %226 = arith.addf %223, %225 : vector<16x96xf32>
    %227 = vector.extract_strided_slice %226 {offsets = [0, 0], sizes = [16, 32], strides = [1, 1]} : vector<16x96xf32> to vector<16x32xf32>
    %228 = vector.extract_strided_slice %226 {offsets = [0, 32], sizes = [16, 32], strides = [1, 1]} : vector<16x96xf32> to vector<16x32xf32>
    %229 = vector.extract_strided_slice %226 {offsets = [0, 64], sizes = [16, 32], strides = [1, 1]} : vector<16x96xf32> to vector<16x32xf32>
    %230 = vector.extract_strided_slice %227 {offsets = [0, 0], sizes = [16, 8], strides = [1, 1]} : vector<16x32xf32> to vector<16x8xf32>
    %231 = arith.truncf %230 : vector<16x8xf32> to vector<16x8xbf16>
    %232 = vector.extract_strided_slice %228 {offsets = [0, 0], sizes = [16, 8], strides = [1, 1]} : vector<16x32xf32> to vector<16x8xf32>
    %233 = arith.truncf %232 : vector<16x8xf32> to vector<16x8xbf16>
    %234 = vector.extract_strided_slice %229 {offsets = [0, 0], sizes = [16, 8], strides = [1, 1]} : vector<16x32xf32> to vector<16x8xf32>
    %235 = arith.truncf %234 : vector<16x8xf32> to vector<16x8xbf16>
    %cst_75 = arith.constant dense<0.000000e+00> : vector<16x16xf32>
    %236 = tpu.matmul %231, %233, %cst_75 {dimension_numbers = #tpu.dot_dimension_numbers<[1], [1], [0], [0], [0, 0, 1, 0], [], []>} : vector<16x8xbf16>, vector<16x8xbf16>, vector<16x16xf32> -> vector<16x16xf32>
    %cst_76 = arith.constant 0.353553385 : f32
    %237 = vector.broadcast %cst_76 : f32 to vector<16x16xf32>
    %238 = arith.mulf %236, %237 : vector<16x16xf32>
    %239 = arith.addf %238, %42 : vector<16x16xf32>
    %cst_77 = arith.constant dense<0xFF800000> : vector<16xf32>
    %240 = vector.multi_reduction <maximumf>, %239, %cst_77 [1] : vector<16x16xf32> to vector<16xf32>
    %241 = vector.shape_cast %240 : vector<16xf32> to vector<16x1xf32>
    %242 = vector.broadcast %241 : vector<16x1xf32> to vector<16x16xf32>
    %243 = arith.subf %239, %242 : vector<16x16xf32>
    %244 = math.exp %243 : vector<16x16xf32>
    %cst_78 = arith.constant dense<0.000000e+00> : vector<16xf32>
    %245 = vector.multi_reduction <add>, %244, %cst_78 [1] : vector<16x16xf32> to vector<16xf32>
    %246 = vector.shape_cast %245 : vector<16xf32> to vector<16x1xf32>
    %247 = tpu.reciprocal %246 {approx = true} : vector<16x1xf32> -> vector<16x1xf32>
    %248 = vector.broadcast %247 : vector<16x1xf32> to vector<16x16xf32>
    %249 = arith.mulf %244, %248 : vector<16x16xf32>
    %250 = arith.truncf %249 : vector<16x16xf32> to vector<16x16xbf16>
    %cst_79 = arith.constant dense<0.000000e+00> : vector<16x8xf32>
    %251 = tpu.matmul %250, %235, %cst_79 {dimension_numbers = #tpu.dot_dimension_numbers<[1], [0], [0], [1], [0, 0, 1, 1], [], []>} : vector<16x16xbf16>, vector<16x8xbf16>, vector<16x8xf32> -> vector<16x8xf32>
    %252 = vector.extract_strided_slice %227 {offsets = [0, 8], sizes = [16, 8], strides = [1, 1]} : vector<16x32xf32> to vector<16x8xf32>
    %253 = arith.truncf %252 : vector<16x8xf32> to vector<16x8xbf16>
    %254 = vector.extract_strided_slice %228 {offsets = [0, 8], sizes = [16, 8], strides = [1, 1]} : vector<16x32xf32> to vector<16x8xf32>
    %255 = arith.truncf %254 : vector<16x8xf32> to vector<16x8xbf16>
    %256 = vector.extract_strided_slice %229 {offsets = [0, 8], sizes = [16, 8], strides = [1, 1]} : vector<16x32xf32> to vector<16x8xf32>
    %257 = arith.truncf %256 : vector<16x8xf32> to vector<16x8xbf16>
    %cst_80 = arith.constant dense<0.000000e+00> : vector<16x16xf32>
    %258 = tpu.matmul %253, %255, %cst_80 {dimension_numbers = #tpu.dot_dimension_numbers<[1], [1], [0], [0], [0, 0, 1, 0], [], []>} : vector<16x8xbf16>, vector<16x8xbf16>, vector<16x16xf32> -> vector<16x16xf32>
    %cst_81 = arith.constant 0.353553385 : f32
    %259 = vector.broadcast %cst_81 : f32 to vector<16x16xf32>
    %260 = arith.mulf %258, %259 : vector<16x16xf32>
    %261 = arith.addf %260, %42 : vector<16x16xf32>
    %cst_82 = arith.constant dense<0xFF800000> : vector<16xf32>
    %262 = vector.multi_reduction <maximumf>, %261, %cst_82 [1] : vector<16x16xf32> to vector<16xf32>
    %263 = vector.shape_cast %262 : vector<16xf32> to vector<16x1xf32>
    %264 = vector.broadcast %263 : vector<16x1xf32> to vector<16x16xf32>
    %265 = arith.subf %261, %264 : vector<16x16xf32>
    %266 = math.exp %265 : vector<16x16xf32>
    %cst_83 = arith.constant dense<0.000000e+00> : vector<16xf32>
    %267 = vector.multi_reduction <add>, %266, %cst_83 [1] : vector<16x16xf32> to vector<16xf32>
    %268 = vector.shape_cast %267 : vector<16xf32> to vector<16x1xf32>
    %269 = tpu.reciprocal %268 {approx = true} : vector<16x1xf32> -> vector<16x1xf32>
    %270 = vector.broadcast %269 : vector<16x1xf32> to vector<16x16xf32>
    %271 = arith.mulf %266, %270 : vector<16x16xf32>
    %272 = arith.truncf %271 : vector<16x16xf32> to vector<16x16xbf16>
    %cst_84 = arith.constant dense<0.000000e+00> : vector<16x8xf32>
    %273 = tpu.matmul %272, %257, %cst_84 {dimension_numbers = #tpu.dot_dimension_numbers<[1], [0], [0], [1], [0, 0, 1, 1], [], []>} : vector<16x16xbf16>, vector<16x8xbf16>, vector<16x8xf32> -> vector<16x8xf32>
    %274 = vector.extract_strided_slice %227 {offsets = [0, 16], sizes = [16, 8], strides = [1, 1]} : vector<16x32xf32> to vector<16x8xf32>
    %275 = arith.truncf %274 : vector<16x8xf32> to vector<16x8xbf16>
    %276 = vector.extract_strided_slice %228 {offsets = [0, 16], sizes = [16, 8], strides = [1, 1]} : vector<16x32xf32> to vector<16x8xf32>
    %277 = arith.truncf %276 : vector<16x8xf32> to vector<16x8xbf16>
    %278 = vector.extract_strided_slice %229 {offsets = [0, 16], sizes = [16, 8], strides = [1, 1]} : vector<16x32xf32> to vector<16x8xf32>
    %279 = arith.truncf %278 : vector<16x8xf32> to vector<16x8xbf16>
    %cst_85 = arith.constant dense<0.000000e+00> : vector<16x16xf32>
    %280 = tpu.matmul %275, %277, %cst_85 {dimension_numbers = #tpu.dot_dimension_numbers<[1], [1], [0], [0], [0, 0, 1, 0], [], []>} : vector<16x8xbf16>, vector<16x8xbf16>, vector<16x16xf32> -> vector<16x16xf32>
    %cst_86 = arith.constant 0.353553385 : f32
    %281 = vector.broadcast %cst_86 : f32 to vector<16x16xf32>
    %282 = arith.mulf %280, %281 : vector<16x16xf32>
    %283 = arith.addf %282, %42 : vector<16x16xf32>
    %cst_87 = arith.constant dense<0xFF800000> : vector<16xf32>
    %284 = vector.multi_reduction <maximumf>, %283, %cst_87 [1] : vector<16x16xf32> to vector<16xf32>
    %285 = vector.shape_cast %284 : vector<16xf32> to vector<16x1xf32>
    %286 = vector.broadcast %285 : vector<16x1xf32> to vector<16x16xf32>
    %287 = arith.subf %283, %286 : vector<16x16xf32>
    %288 = math.exp %287 : vector<16x16xf32>
    %cst_88 = arith.constant dense<0.000000e+00> : vector<16xf32>
    %289 = vector.multi_reduction <add>, %288, %cst_88 [1] : vector<16x16xf32> to vector<16xf32>
    %290 = vector.shape_cast %289 : vector<16xf32> to vector<16x1xf32>
    %291 = tpu.reciprocal %290 {approx = true} : vector<16x1xf32> -> vector<16x1xf32>
    %292 = vector.broadcast %291 : vector<16x1xf32> to vector<16x16xf32>
    %293 = arith.mulf %288, %292 : vector<16x16xf32>
    %294 = arith.truncf %293 : vector<16x16xf32> to vector<16x16xbf16>
    %cst_89 = arith.constant dense<0.000000e+00> : vector<16x8xf32>
    %295 = tpu.matmul %294, %279, %cst_89 {dimension_numbers = #tpu.dot_dimension_numbers<[1], [0], [0], [1], [0, 0, 1, 1], [], []>} : vector<16x16xbf16>, vector<16x8xbf16>, vector<16x8xf32> -> vector<16x8xf32>
    %296 = vector.extract_strided_slice %227 {offsets = [0, 24], sizes = [16, 8], strides = [1, 1]} : vector<16x32xf32> to vector<16x8xf32>
    %297 = arith.truncf %296 : vector<16x8xf32> to vector<16x8xbf16>
    %298 = vector.extract_strided_slice %228 {offsets = [0, 24], sizes = [16, 8], strides = [1, 1]} : vector<16x32xf32> to vector<16x8xf32>
    %299 = arith.truncf %298 : vector<16x8xf32> to vector<16x8xbf16>
    %300 = vector.extract_strided_slice %229 {offsets = [0, 24], sizes = [16, 8], strides = [1, 1]} : vector<16x32xf32> to vector<16x8xf32>
    %301 = arith.truncf %300 : vector<16x8xf32> to vector<16x8xbf16>
    %cst_90 = arith.constant dense<0.000000e+00> : vector<16x16xf32>
    %302 = tpu.matmul %297, %299, %cst_90 {dimension_numbers = #tpu.dot_dimension_numbers<[1], [1], [0], [0], [0, 0, 1, 0], [], []>} : vector<16x8xbf16>, vector<16x8xbf16>, vector<16x16xf32> -> vector<16x16xf32>
    %cst_91 = arith.constant 0.353553385 : f32
    %303 = vector.broadcast %cst_91 : f32 to vector<16x16xf32>
    %304 = arith.mulf %302, %303 : vector<16x16xf32>
    %305 = arith.addf %304, %42 : vector<16x16xf32>
    %cst_92 = arith.constant dense<0xFF800000> : vector<16xf32>
    %306 = vector.multi_reduction <maximumf>, %305, %cst_92 [1] : vector<16x16xf32> to vector<16xf32>
    %307 = vector.shape_cast %306 : vector<16xf32> to vector<16x1xf32>
    %308 = vector.broadcast %307 : vector<16x1xf32> to vector<16x16xf32>
    %309 = arith.subf %305, %308 : vector<16x16xf32>
    %310 = math.exp %309 : vector<16x16xf32>
    %cst_93 = arith.constant dense<0.000000e+00> : vector<16xf32>
    %311 = vector.multi_reduction <add>, %310, %cst_93 [1] : vector<16x16xf32> to vector<16xf32>
    %312 = vector.shape_cast %311 : vector<16xf32> to vector<16x1xf32>
    %313 = tpu.reciprocal %312 {approx = true} : vector<16x1xf32> -> vector<16x1xf32>
    %314 = vector.broadcast %313 : vector<16x1xf32> to vector<16x16xf32>
    %315 = arith.mulf %310, %314 : vector<16x16xf32>
    %316 = arith.truncf %315 : vector<16x16xf32> to vector<16x16xbf16>
    %cst_94 = arith.constant dense<0.000000e+00> : vector<16x8xf32>
    %317 = tpu.matmul %316, %301, %cst_94 {dimension_numbers = #tpu.dot_dimension_numbers<[1], [0], [0], [1], [0, 0, 1, 1], [], []>} : vector<16x16xbf16>, vector<16x8xbf16>, vector<16x8xf32> -> vector<16x8xf32>
    %318 = tpu.concatenate %251, %273, %295, %317 in 1 : vector<16x8xf32>, vector<16x8xf32>, vector<16x8xf32>, vector<16x8xf32> -> vector<16x32xf32>
    %319 = arith.truncf %318 : vector<16x32xf32> to vector<16x32xbf16>
    %cst_95 = arith.constant dense<0.000000e+00> : vector<16x32xf32>
    %320 = tpu.matmul %319, %219, %cst_95 {dimension_numbers = #tpu.dot_dimension_numbers<[1], [0], [0], [1], [0, 0, 1, 1], [], []>} : vector<16x32xbf16>, vector<32x32xbf16>, vector<16x32xf32> -> vector<16x32xf32>
    %c9 = arith.constant 9 : index
    %c0_96 = arith.constant 0 : index
    %321 = vector.load %arg4[%c9, %c0_96] : memref<21x128xf32, #tpu.memory_space<vmem>>, vector<1x32xf32>
    %322 = vector.broadcast %321 : vector<1x32xf32> to vector<16x32xf32>
    %323 = arith.addf %320, %322 : vector<16x32xf32>
    %324 = arith.addf %217, %323 : vector<16x32xf32>
    %c10 = arith.constant 10 : index
    %c0_97 = arith.constant 0 : index
    %325 = vector.load %arg4[%c10, %c0_97] : memref<21x128xf32, #tpu.memory_space<vmem>>, vector<1x32xf32>
    %c11 = arith.constant 11 : index
    %c0_98 = arith.constant 0 : index
    %326 = vector.load %arg4[%c11, %c0_98] : memref<21x128xf32, #tpu.memory_space<vmem>>, vector<1x32xf32>
    %cst_99 = arith.constant dense<0.000000e+00> : vector<16xf32>
    %327 = vector.multi_reduction <add>, %324, %cst_99 [1] : vector<16x32xf32> to vector<16xf32>
    %328 = vector.shape_cast %327 : vector<16xf32> to vector<16x1xf32>
    %cst_100 = arith.constant 3.200000e+01 : f32
    %329 = vector.broadcast %cst_100 : f32 to vector<16x1xf32>
    %330 = arith.divf %328, %329 : vector<16x1xf32>
    %331 = vector.broadcast %330 : vector<16x1xf32> to vector<16x32xf32>
    %332 = arith.subf %324, %331 : vector<16x32xf32>
    %333 = arith.mulf %332, %332 : vector<16x32xf32>
    %cst_101 = arith.constant dense<0.000000e+00> : vector<16xf32>
    %334 = vector.multi_reduction <add>, %333, %cst_101 [1] : vector<16x32xf32> to vector<16xf32>
    %335 = vector.shape_cast %334 : vector<16xf32> to vector<16x1xf32>
    %cst_102 = arith.constant 3.200000e+01 : f32
    %336 = vector.broadcast %cst_102 : f32 to vector<16x1xf32>
    %337 = arith.divf %335, %336 : vector<16x1xf32>
    %cst_103 = arith.constant 9.99999974E-6 : f32
    %338 = vector.broadcast %cst_103 : f32 to vector<16x1xf32>
    %339 = arith.addf %337, %338 : vector<16x1xf32>
    %340 = math.rsqrt %339 : vector<16x1xf32>
    %341 = vector.broadcast %340 : vector<16x1xf32> to vector<16x32xf32>
    %342 = arith.mulf %332, %341 : vector<16x32xf32>
    %343 = vector.broadcast %325 : vector<1x32xf32> to vector<16x32xf32>
    %344 = arith.mulf %342, %343 : vector<16x32xf32>
    %345 = vector.broadcast %326 : vector<1x32xf32> to vector<16x32xf32>
    %346 = arith.addf %344, %345 : vector<16x32xf32>
    %347 = arith.truncf %346 : vector<16x32xf32> to vector<16x32xbf16>
    %cst_104 = arith.constant dense<0.000000e+00> : vector<16x64xf32>
    %348 = tpu.matmul %347, %220, %cst_104 {dimension_numbers = #tpu.dot_dimension_numbers<[1], [0], [0], [1], [0, 0, 1, 1], [], []>} : vector<16x32xbf16>, vector<32x64xbf16>, vector<16x64xf32> -> vector<16x64xf32>
    %c12 = arith.constant 12 : index
    %c0_105 = arith.constant 0 : index
    %349 = vector.load %arg4[%c12, %c0_105] : memref<21x128xf32, #tpu.memory_space<vmem>>, vector<1x64xf32>
    %350 = vector.broadcast %349 : vector<1x64xf32> to vector<16x64xf32>
    %351 = arith.addf %348, %350 : vector<16x64xf32>
    %cst_106 = arith.constant 5.000000e-01 : f32
    %352 = vector.broadcast %cst_106 : f32 to vector<16x64xf32>
    %353 = arith.mulf %352, %351 : vector<16x64xf32>
    %cst_107 = arith.constant 4.471500e-02 : f32
    %354 = vector.broadcast %cst_107 : f32 to vector<16x64xf32>
    %355 = arith.mulf %354, %351 : vector<16x64xf32>
    %356 = arith.mulf %355, %351 : vector<16x64xf32>
    %357 = arith.mulf %356, %351 : vector<16x64xf32>
    %358 = arith.addf %351, %357 : vector<16x64xf32>
    %cst_108 = arith.constant 0.797884583 : f32
    %359 = vector.broadcast %cst_108 : f32 to vector<16x64xf32>
    %360 = arith.mulf %359, %358 : vector<16x64xf32>
    %361 = math.tanh %360 : vector<16x64xf32>
    %cst_109 = arith.constant 1.000000e+00 : f32
    %362 = vector.broadcast %cst_109 : f32 to vector<16x64xf32>
    %363 = arith.addf %362, %361 : vector<16x64xf32>
    %364 = arith.mulf %353, %363 : vector<16x64xf32>
    %365 = arith.truncf %364 : vector<16x64xf32> to vector<16x64xbf16>
    %cst_110 = arith.constant dense<0.000000e+00> : vector<16x32xf32>
    %366 = tpu.matmul %365, %221, %cst_110 {dimension_numbers = #tpu.dot_dimension_numbers<[1], [0], [0], [1], [0, 0, 1, 1], [], []>} : vector<16x64xbf16>, vector<64x32xbf16>, vector<16x32xf32> -> vector<16x32xf32>
    %c13 = arith.constant 13 : index
    %c0_111 = arith.constant 0 : index
    %367 = vector.load %arg4[%c13, %c0_111] : memref<21x128xf32, #tpu.memory_space<vmem>>, vector<1x32xf32>
    %368 = vector.broadcast %367 : vector<1x32xf32> to vector<16x32xf32>
    %369 = arith.addf %366, %368 : vector<16x32xf32>
    %370 = arith.addf %346, %369 : vector<16x32xf32>
    %c14 = arith.constant 14 : index
    %c0_112 = arith.constant 0 : index
    %371 = vector.load %arg4[%c14, %c0_112] : memref<21x128xf32, #tpu.memory_space<vmem>>, vector<1x32xf32>
    %c15 = arith.constant 15 : index
    %c0_113 = arith.constant 0 : index
    %372 = vector.load %arg4[%c15, %c0_113] : memref<21x128xf32, #tpu.memory_space<vmem>>, vector<1x32xf32>
    %cst_114 = arith.constant dense<0.000000e+00> : vector<16xf32>
    %373 = vector.multi_reduction <add>, %370, %cst_114 [1] : vector<16x32xf32> to vector<16xf32>
    %374 = vector.shape_cast %373 : vector<16xf32> to vector<16x1xf32>
    %cst_115 = arith.constant 3.200000e+01 : f32
    %375 = vector.broadcast %cst_115 : f32 to vector<16x1xf32>
    %376 = arith.divf %374, %375 : vector<16x1xf32>
    %377 = vector.broadcast %376 : vector<16x1xf32> to vector<16x32xf32>
    %378 = arith.subf %370, %377 : vector<16x32xf32>
    %379 = arith.mulf %378, %378 : vector<16x32xf32>
    %cst_116 = arith.constant dense<0.000000e+00> : vector<16xf32>
    %380 = vector.multi_reduction <add>, %379, %cst_116 [1] : vector<16x32xf32> to vector<16xf32>
    %381 = vector.shape_cast %380 : vector<16xf32> to vector<16x1xf32>
    %cst_117 = arith.constant 3.200000e+01 : f32
    %382 = vector.broadcast %cst_117 : f32 to vector<16x1xf32>
    %383 = arith.divf %381, %382 : vector<16x1xf32>
    %cst_118 = arith.constant 9.99999974E-6 : f32
    %384 = vector.broadcast %cst_118 : f32 to vector<16x1xf32>
    %385 = arith.addf %383, %384 : vector<16x1xf32>
    %386 = math.rsqrt %385 : vector<16x1xf32>
    %387 = vector.broadcast %386 : vector<16x1xf32> to vector<16x32xf32>
    %388 = arith.mulf %378, %387 : vector<16x32xf32>
    %389 = vector.broadcast %371 : vector<1x32xf32> to vector<16x32xf32>
    %390 = arith.mulf %388, %389 : vector<16x32xf32>
    %391 = vector.broadcast %372 : vector<1x32xf32> to vector<16x32xf32>
    %392 = arith.addf %390, %391 : vector<16x32xf32>
    %393 = tpu.iota {dimensions = array<i32: 0>} : vector<2x16xi32>
    %394 = tpu.iota {dimensions = array<i32: 1>} : vector<2x16xi32>
    %c8_i32 = arith.constant 8 : i32
    %395 = vector.broadcast %c8_i32 : i32 to vector<2x16xi32>
    %396 = arith.muli %393, %395 : vector<2x16xi32>
    %397 = arith.cmpi eq, %394, %396 : vector<2x16xi32>
    %398 = arith.extui %397 : vector<2x16xi1> to vector<2x16xi32>
    %399 = arith.sitofp %398 : vector<2x16xi32> to vector<2x16xf32>
    %cst_119 = arith.constant dense<0.000000e+00> : vector<2x32xf32>
    %400 = tpu.matmul %399, %392, %cst_119 {dimension_numbers = #tpu.dot_dimension_numbers<[1], [0], [0], [1], [0, 0, 1, 1], [], []>} : vector<2x16xf32>, vector<16x32xf32>, vector<2x32xf32> -> vector<2x32xf32>
    %c320 = arith.constant 320 : index
    %c0_120 = arith.constant 0 : index
    %401 = vector.load %arg3[%c320, %c0_120] : memref<384x128xbf16, #tpu.memory_space<vmem>>, vector<32x32xbf16>
    %c352 = arith.constant 352 : index
    %c0_121 = arith.constant 0 : index
    %402 = vector.load %arg3[%c352, %c0_121] : memref<384x128xbf16, #tpu.memory_space<vmem>>, vector<32x128xbf16>
    %403 = arith.truncf %400 : vector<2x32xf32> to vector<2x32xbf16>
    %cst_122 = arith.constant dense<0.000000e+00> : vector<2x32xf32>
    %404 = tpu.matmul %403, %401, %cst_122 {dimension_numbers = #tpu.dot_dimension_numbers<[1], [0], [0], [1], [0, 0, 1, 1], [], []>} : vector<2x32xbf16>, vector<32x32xbf16>, vector<2x32xf32> -> vector<2x32xf32>
    %c19 = arith.constant 19 : index
    %c0_123 = arith.constant 0 : index
    %405 = vector.load %arg4[%c19, %c0_123] : memref<21x128xf32, #tpu.memory_space<vmem>>, vector<1x32xf32>
    %406 = vector.broadcast %405 : vector<1x32xf32> to vector<2x32xf32>
    %407 = arith.addf %404, %406 : vector<2x32xf32>
    %408 = math.tanh %407 : vector<2x32xf32>
    %409 = arith.truncf %408 : vector<2x32xf32> to vector<2x32xbf16>
    %cst_124 = arith.constant dense<0.000000e+00> : vector<2x128xf32>
    %410 = tpu.matmul %409, %402, %cst_124 {dimension_numbers = #tpu.dot_dimension_numbers<[1], [0], [0], [1], [0, 0, 1, 1], [], []>} : vector<2x32xbf16>, vector<32x128xbf16>, vector<2x128xf32> -> vector<2x128xf32>
    %c20 = arith.constant 20 : index
    %c0_125 = arith.constant 0 : index
    %411 = vector.load %arg4[%c20, %c0_125] : memref<21x128xf32, #tpu.memory_space<vmem>>, vector<1x128xf32>
    %412 = vector.broadcast %411 : vector<1x128xf32> to vector<2x128xf32>
    %413 = arith.addf %410, %412 : vector<2x128xf32>
    %c0_126 = arith.constant 0 : index
    %c0_127 = arith.constant 0 : index
    %414 = vector.load %arg5[%c0_126, %c0_127] : memref<2x128xf32, #tpu.memory_space<vmem>>, vector<2x128xf32>
    tpu.vector_store %arg5[%c0_126, %c0_127], %413 {strides = array<i32>} : memref<2x128xf32, #tpu.memory_space<vmem>>, vector<2x128xf32>,
    return
  }
}

</mosaic_0001>

<llo_original>
// kernel: mul.10
$region0: #{mul.10}
  %s0 = inlined_call_operand.vmem [shape: f32[2,8], index: 0, kind: input, shape index: {}]
  %s1 = inlined_call_operand.vmem [shape: f32[16], index: 1, kind: output, shape index: {}]
  $region1: #{mul.10} parent=0
    #allocation0 [shape = 'u8[4096]{0}', space=vmem, size = 0x1000, scoped, tag = 'scoped mem for output reshape']
    #allocation1 [shape = 'u8[4096]{0}', space=vmem, size = 0x1000, scoped, tag = 'scoped mem for input reshape']
    %s3 = ssub.s32 4, 1
    %v4 = vld [vmem:[%s0] sm:%s3]
    %5 = vst [vmem:[#allocation1] sm:%s3] %v4
    %v6 = vld [vmem:[#allocation1] sm:$0x1]
    %vm7 = vcmask 64512
    %8 = vst.msk [vmem:[#allocation0] sm:$0x1] %vm7, %v6
    %s9 = scalar_lea.vmem [#allocation1], 1
    %v10 = vld [vmem:[%s9] sm:$0x1]
    %11 = vrot.lane.b32.xlu0 %v10, 8
    %v12 = vpop.permute.xlu0 %11
    %vm13 = vcmask 130112
    %14 = vst.msk [vmem:[#allocation0] sm:$0x1] %vm13, %v12
    %s16 = ssub.s32 2, 1
    %v17 = vld [vmem:[#allocation0] sm:%s16]
    %s19 = ssub.s32 2, 1
    %20 = vst [vmem:[%s1] sm:%s19] %v17

// kernel: roberta_forward.1
$region0: #{roberta_forward.1}
  #allocation0 [shape = 'u32[]', space=smem, size = 0x4, offset = 0x4, fixed_abs, tag = 'smem constant byte address 0x4 - core index']
  #allocation1 [shape = 'u32[72,128]{1,0:T(1,128)}', space=vmem, size = 0x9000, scoped, tag = 'internal scratch']
  %s0 = inlined_call_operand.vmem [shape: s32[16,2], index: 0, kind: input, shape index: {}]
  %s1 = inlined_call_operand.vmem [shape: f32[16,16], index: 1, kind: input, shape index: {}]
  %s2 = inlined_call_operand.vmem [shape: f32[136,32], index: 2, kind: input, shape index: {}]
  %s3 = inlined_call_operand.vmem [shape: bf16[384,128], index: 3, kind: input, shape index: {}]
  %s4 = inlined_call_operand.hbm [shape: f32[21,128], index: 4, kind: input, shape index: {}]
  %s5 = inlined_call_operand.hbm [shape: f32[2,128], index: 5, kind: output, shape index: {}]
  %s6 = sld [smem:[#allocation0]]
  $region34: #{roberta_forward.1} parent=0
    _
  %s8 = ssub.s32 1, %s6
  %s9 = scalar_select 0, %s8, %s6
  $region1: #{roberta_forward.1} parent=0
    #allocation2 [shape = 'u8[12288]{0}', space=vmem, size = 0x3000, scoped, tag = 'input window, operand 4, single buffered']
    #allocation3 [shape = 's32[1]{0}', space=sflag, size = 0x4, scoped, tag = 'scoped memory for roberta_forward.1']
    #allocation4 [shape = 's32[1]{0}', space=sflag, size = 0x4, scoped, tag = 'scoped memory for roberta_forward.1']
    #allocation5 [shape = 'u8[1024]{0}', space=vmem, size = 0x400, scoped, tag = 'output window, operand 0, single buffered']
    %10 = vsyncpa [#allocation3], 0
    %11 = vsyncpa [#allocation4], 0
    // Predicated region
    $region2: #{roberta_forward.1} parent=1 // pred_check
      _
    $region3: #{roberta_forward.1} parent=1 // pred_check_branch
      %13 = sbr.rel (0) target = $region5
    $region4: #{roberta_forward.1} parent=1 // pred_region
      _
    $region5: #{roberta_forward.1} parent=1 // pred_fallthru
      _
    // Predicated region
    $region6: #{roberta_forward.1} parent=1 // pred_check
      _
    $region7: #{roberta_forward.1} parent=1 // pred_check_branch
      %15 = sbr.rel (0) target = $region9
    $region8: #{roberta_forward.1} parent=1 // pred_region
      _
    $region9: #{roberta_forward.1} parent=1 // pred_fallthru
      _
    // Predicated region
    $region10: #{roberta_forward.1} parent=1 // pred_check
      _
    $region11: #{roberta_forward.1} parent=1 // pred_check_branch
      %17 = sbr.rel (0) target = $region13
    $region12: #{roberta_forward.1} parent=1 // pred_region
      _
    $region13: #{roberta_forward.1} parent=1 // pred_fallthru
      _
    // Predicated region
    $region14: #{roberta_forward.1} parent=1 // pred_check
      _
    $region15: #{roberta_forward.1} parent=1 // pred_check_branch
      %19 = sbr.rel (0) target = $region17
    $region16: #{roberta_forward.1} parent=1 // pred_region
      _
    $region17: #{roberta_forward.1} parent=1 // pred_fallthru
      _
    // Predicated region
    $region18: #{roberta_forward.1} parent=1 // pred_check
      _
    $region19: #{roberta_forward.1} parent=1 // pred_check_branch
      %21 = sbr.rel (0) target = $region21
    $region20: #{roberta_forward.1} parent=1 // pred_region
      %23 = vsyncadd [#allocation3], 0
      %s24 = sshll.u32 %s4, 4
      %s25 = int_to_ptr.hbm [resolvable:$true] %s24
      %s26 = sshll.u32 [#allocation2], 4
      %s27 = int_to_ptr.vmem [resolvable:$true] %s26
      %32 = dma.hbm_to_vmem [thread:$0]  %s25, 384, %s27, [#allocation3], 128, 128, 8
    $region21: #{roberta_forward.1} parent=1 // pred_fallthru
      _
    // Predicated region
    $region22: #{roberta_forward.1} parent=1 // pred_check
      _
    $region23: #{roberta_forward.1} parent=1 // pred_check_branch
      %34 = sbr.rel (0) target = $region25
    $region24: #{roberta_forward.1} parent=1 // pred_region
      %36 = dma.done [#allocation3], 384
    $region25: #{roberta_forward.1} parent=1 // pred_fallthru
      _
    %v38 = vld [vmem:[%s0] sm:$0xff]
    %v39 = vld [vmem:[%s0 + $0x8] sm:$0xff]
    %v40 = vlaneseq
    %v41 = vand.u32 %v40, 127
    %42 = vset.pattern.permute.xlu0 0
    %43 = vperm.xlu0 %42, %v38
    %v44 = vpop.permute.xlu0 %43
    %45 = vset.pattern.permute.xlu0 0
    %46 = vperm.xlu0 %45, %v39
    %v47 = vpop.permute.xlu0 %46
    %vm48 = vcmp.eq.s32.totalorder %v41, %v44
    %vm49 = vcmp.eq.s32.totalorder %v41, %v47
    %v50 = vsel %vm48, 1, 0
    %v51 = vsel %vm49, 1, 0
    %v52 = vcvt.s32.f32 %v50
    %v53 = vcvt.s32.f32 %v51
    %54 = vset.pattern.permute.xlu0 1
    %55 = vperm.xlu0 %54, %v38
    %v56 = vpop.permute.xlu0 %55
    %57 = vset.pattern.permute.xlu0 1
    %58 = vperm.xlu0 %57, %v39
    %v59 = vpop.permute.xlu0 %58
    %vm60 = vcmp.eq.s32.totalorder %v41, %v56
    %vm61 = vcmp.eq.s32.totalorder %v41, %v59
    %v62 = vsel %vm60, 1, 0
    %v63 = vsel %vm61, 1, 0
    %v64 = vcvt.s32.f32 %v62
    %v65 = vcvt.s32.f32 %v63
    %v66 = vld [vmem:[%s2] sm:$0xff]
    %v67 = vld [vmem:[%s2 + $0x8] sm:$0xff]
    %v68 = vld [vmem:[%s2 + $0x10] sm:$0xff]
    %v69 = vld [vmem:[%s2 + $0x18] sm:$0xff]
    %v70 = vld [vmem:[%s2 + $0x20] sm:$0xff]
    %v71 = vld [vmem:[%s2 + $0x28] sm:$0xff]
    %v72 = vld [vmem:[%s2 + $0x30] sm:$0xff]
    %v73 = vld [vmem:[%s2 + $0x38] sm:$0xff]
    %v74 = vld [vmem:[%s2 + $0x40] sm:$0xff]
    %v75 = vld [vmem:[%s2 + $0x48] sm:$0xff]
    %v76 = vld [vmem:[%s2 + $0x50] sm:$0xff]
    %v77 = vld [vmem:[%s2 + $0x58] sm:$0xff]
    %v78 = vld [vmem:[%s2 + $0x60] sm:$0xff]
    %v79 = vld [vmem:[%s2 + $0x68] sm:$0xff]
    %v80 = vld [vmem:[%s2 + $0x70] sm:$0xff]
    %v81 = vld [vmem:[%s2 + $0x78] sm:$0xff]
    %v82 = vld [vmem:[%s2 + $0x80] sm:$0xff]
    %vm83 = vcmask 261120
    %v85 = vsel %vm83, %v64, 0
    %v88 = vsel %vm83, %v65, 0
    %90 = vmatpush.msra.mxu0 0.0
    %91 = vmatpush.msra.mxu0 0.0
    %92 = vmatpush.msra.mxu0 0.0
    %93 = vmatpush.msra.mxu0 0.0
    %94 = vmatpush.msra.mxu0 0.0
    %95 = vmatpush.msra.mxu0 0.0
    %96 = vmatpush.msra.mxu0 0.0
    %97 = vmatpush.msra.mxu0 0.0
    %98 = vmatpush.msra.mxu0 0.0
    %99 = vmatpush.msra.mxu0 0.0
    %100 = vmatpush.msra.mxu0 0.0
    %101 = vmatpush.msra.mxu0 0.0
    %102 = vmatpush.msra.mxu0 %v82
    %103 = vmatpush.msra.mxu0 %v81
    %104 = vmatpush.msra.mxu0 %v80
    %105 = vmatpush.msra.mxu0 %v79
    %106 = vmatmul.f32.gmra.mxu0 %v85
    %v107 = vpop.f32.mrf.mxu0
    %v108 = vadd.f32 0.0, %v107
    %109 = vmatmul.f32.gmra.mxu0 %v88
    %v110 = vpop.f32.mrf.mxu0
    %v111 = vadd.f32 0.0, %v110
    %112 = vdwg.mxu0
    %vm113 = vcmask 850944
    %v115 = vsel %vm113, %v52, 0
    %v118 = vsel %vm113, %v53, 0
    %120 = vmatpush.msra.mxu0 0.0
    %121 = vmatpush.msra.mxu0 0.0
    %122 = vmatpush.msra.mxu0 0.0
    %123 = vmatpush.msra.mxu0 %v78
    %124 = vmatpush.msra.mxu0 %v77
    %125 = vmatpush.msra.mxu0 %v76
    %126 = vmatpush.msra.mxu0 %v75
    %127 = vmatpush.msra.mxu0 %v74
    %128 = vmatpush.msra.mxu0 %v73
    %129 = vmatpush.msra.mxu0 %v72
    %130 = vmatpush.msra.mxu0 %v71
    %131 = vmatpush.msra.mxu0 %v70
    %132 = vmatpush.msra.mxu0 %v69
    %133 = vmatpush.msra.mxu0 %v68
    %134 = vmatpush.msra.mxu0 %v67
    %135 = vmatpush.msra.mxu0 %v66
    %136 = vmatmul.f32.gmra.mxu0 %v115
    %v137 = vpop.f32.mrf.mxu0
    %v138 = vadd.f32 %v108, %v137
    %139 = vmatmul.f32.gmra.mxu0 %v118
    %v140 = vpop.f32.mrf.mxu0
    %v141 = vadd.f32 %v111, %v140
    %142 = vdwg.mxu0
    %v143 = vld [vmem:[#allocation2 + $0x12] sm:$0x1]
    %v144 = vperm.slane %v143, 0
    %v145 = vadd.f32 %v138, %v144
    %v146 = vadd.f32 %v141, %v144
    %v147 = vld [vmem:[#allocation2 + $0x10] sm:$0x1]
    %v148 = vld [vmem:[#allocation2 + $0x11] sm:$0x1]
    %v149 = vsel %vm83, %v145, 0.0
    %150 = vadd.xlane.f32.xlu0 %v149
    %v151 = vpop.xlane.xlu0 %150
    %v152 = vsel %vm83, %v146, 0.0
    %153 = vadd.xlane.f32.xlu0 %v152
    %v154 = vpop.xlane.xlu0 %153
    %v155 = vrcp.pop 32.0
    %v156 = vmul.f32 32.0, %v155
    %v157 = vsub.f32 1.0, %v156
    %v158 = vmul.f32 %v155, %v157
    %v159 = vadd.f32 %v155, %v158
    %vm160 = vweird.f32 %v155
    %v161 = vsel %vm160, %v155, %v159
    %v162 = vmul.f32 %v151, %v161
    %v163 = vmul.f32 %v154, %v161
    %v164 = vsub.f32 %v145, %v162
    %v165 = vsub.f32 %v146, %v163
    %v166 = vmul.f32 %v164, %v164
    %v167 = vmul.f32 %v165, %v165
    %v168 = vsel %vm83, %v166, 0.0
    %169 = vadd.xlane.f32.xlu0 %v168
    %v170 = vpop.xlane.xlu0 %169
    %v171 = vsel %vm83, %v167, 0.0
    %172 = vadd.xlane.f32.xlu0 %v171
    %v173 = vpop.xlane.xlu0 %172
    %v174 = vmul.f32 %v170, %v161
    %v175 = vmul.f32 %v173, %v161
    %v176 = vadd.f32 %v174, 1e-05
    %v177 = vadd.f32 %v175, 1e-05
    %v178 = vrsqrt.pop %v176
    %v179 = vmul.f32 %v178, %v176
    %v180 = vmul.f32 %v179, %v178
    %v181 = vmul.f32 0.5, %v180
    %v182 = vsub.f32 1.5, %v181
    %v183 = vmul.f32 %v178, %v182
    %vm184 = vweird.f32 %v176
    %vm185 = vweird.f32 %v178
    %vm186 = vmor %vm184, %vm185
    %v187 = vsel %vm186, %v178, %v183
    %v188 = vrsqrt.pop %v177
    %v189 = vmul.f32 %v188, %v177
    %v190 = vmul.f32 %v189, %v188
    %v191 = vmul.f32 0.5, %v190
    %v192 = vsub.f32 1.5, %v191
    %v193 = vmul.f32 %v188, %v192
    %vm194 = vweird.f32 %v177
    %vm195 = vweird.f32 %v188
    %vm196 = vmor %vm194, %vm195
    %v197 = vsel %vm196, %v188, %v193
    %v198 = vmul.f32 %v164, %v187
    %v199 = vmul.f32 %v165, %v197
    %v200 = vperm.slane %v147, 0
    %v201 = vmul.f32 %v198, %v200
    %v202 = vmul.f32 %v199, %v200
    %v203 = vperm.slane %v148, 0
    %v204 = vadd.f32 %v201, %v203
    %v205 = vadd.f32 %v202, %v203
    %v206 = vld [vmem:[%s1] sm:$0xff]
    %v207 = vld [vmem:[%s1 + $0x8] sm:$0xff]
    %v208 = vld [vmem:[%s3] sm:$0xf]
    %v209 = vld [vmem:[%s3 + $0x4] sm:$0xf]
    %v210 = vld [vmem:[%s3 + $0x8] sm:$0xf]
    %v211 = vld [vmem:[%s3 + $0xc] sm:$0xf]
    %v212 = vld [vmem:[%s3 + $0x10] sm:$0xf]
    %v213 = vld [vmem:[%s3 + $0x14] sm:$0xf]
    %v214 = vld [vmem:[%s3 + $0x18] sm:$0xf]
    %v215 = vld [vmem:[%s3 + $0x1c] sm:$0xf]
    %v216 = vld [vmem:[%s3 + $0x20] sm:$0xf]
    %v217 = vld [vmem:[%s3 + $0x24] sm:$0xf]
    %v218 = vld [vmem:[%s3 + $0x28] sm:$0xf]
    %v219 = vld [vmem:[%s3 + $0x2c] sm:$0xf]
    %v220 = vld [vmem:[%s3 + $0x30] sm:$0xf]
    %v221 = vld [vmem:[%s3 + $0x34] sm:$0xf]
    %v222 = vld [vmem:[%s3 + $0x38] sm:$0xf]
    %v223 = vld [vmem:[%s3 + $0x3c] sm:$0xf]
    %v224 = vld [vmem:[%s3 + $0x40] sm:$0xf]
    %v225 = vld [vmem:[%s3 + $0x44] sm:$0xf]
    %v226 = vld [vmem:[%s3 + $0x48] sm:$0xf]
    %v227 = vld [vmem:[%s3 + $0x4c] sm:$0xf]
    %v228 = vpack.c.bf16 %v205, %v204
    %v229 = vld [vmem:[#allocation2] sm:$0x1]
    %v230 = vperm.slane %v229, 0
    %v235 = vunpack.c.l.b16 %v208
    %v236 = vunpack.c.l.b16 %v209
    %v237 = vunpack.c.l.b16 %v210
    %v238 = vunpack.c.l.b16 %v211
    %v239 = vpack.c.b16 %v236, %v235
    %v240 = vpack.c.b16 %v238, %v237
    %v244 = vsel %vm83, %v228, 0
    %246 = vmatpush.bf16.msra.mxu0 0
    %247 = vmatpush.bf16.msra.mxu0 0
    %248 = vmatpush.bf16.msra.mxu0 0
    %249 = vmatpush.bf16.msra.mxu0 0
    %250 = vmatpush.bf16.msra.mxu0 0
    %251 = vmatpush.bf16.msra.mxu0 0
    %252 = vmatpush.bf16.msra.mxu0 %v240
    %253 = vmatpush.bf16.msra.mxu0 %v239
    %254 = vmatmul.bf16.gmra.mxu0 %v244
    %v255 = vpop.f32.mrf.mxu0
    %v256 = vadd.f32 %v230, %v255
    %v257 = vpop.f32.mrf.mxu0
    %v258 = vadd.f32 %v230, %v257
    %259 = vdwg.mxu0
    %v260 = vpack.c.bf16 %v258, %v256
    %262 = vrot.lane.b32.xlu0 %v260, 96
    %v263 = vpop.permute.xlu0 %262
    %vm264 = vcmask 64512
    %v266 = vsel %vm264, %v260, 0
    %v269 = vsel %vm264, %v263, 0
    %271 = vmatpush.bf16.xpose.msra.mxu0 0
    %272 = vmatpush.bf16.xpose.msra.mxu0 0
    %273 = vmatpush.bf16.xpose.msra.mxu0 0
    %274 = vmatpush.bf16.xpose.msra.mxu0 0
    %275 = vmatpush.bf16.xpose.msra.mxu0 0
    %276 = vmatpush.bf16.xpose.msra.mxu0 0
    %277 = vmatpush.bf16.xpose.msra.mxu0 0
    %278 = vmatpush.bf16.xpose.msra.mxu0 %v269
    %279 = vmatmul.bf16.gmra.mxu0 %v266
    %v280 = vpop.f32.mrf.mxu0
    %v281 = vadd.f32 0.0, %v280
    %v282 = vpop.f32.mrf.mxu0
    %v283 = vadd.f32 0.0, %v282
    %284 = vdwg.mxu0
    %v285 = vmul.f32 %v281, 0.35355338
    %v286 = vmul.f32 %v283, 0.35355338
    %v287 = vadd.f32 %v285, %v206
    %v288 = vadd.f32 %v286, %v207
    %vm289 = vcmask 130048
    %v290 = vsel %vm289, %v287, -inf
    %291 = vmax.xlane.f32.xlu0 %v290
    %v292 = vpop.xlane.xlu0 %291
    %v293 = vsel %vm289, %v288, -inf
    %294 = vmax.xlane.f32.xlu0 %v293
    %v295 = vpop.xlane.xlu0 %294
    %v296 = vsub.f32 %v287, %v292
    %v297 = vsub.f32 %v288, %v295
    %v298 = vmul.f32 %v296, 1.442695
    %v299 = vpow.pop %v298
    %v300 = vmul.f32 %v297, 1.442695
    %v301 = vpow.pop %v300
    %v302 = vsel %vm289, %v299, 0.0
    %303 = vadd.xlane.f32.xlu0 %v302
    %v304 = vpop.xlane.xlu0 %303
    %v305 = vsel %vm289, %v301, 0.0
    %306 = vadd.xlane.f32.xlu0 %v305
    %v307 = vpop.xlane.xlu0 %306
    %v308 = vrcp.pop %v304
    %v309 = vrcp.pop %v307
    %v310 = vmul.f32 %v299, %v308
    %v311 = vmul.f32 %v301, %v309
    %v312 = vpack.c.bf16 %v311, %v310
    %313 = vrot.lane.b32.xlu0 %v260, 64
    %v314 = vpop.permute.xlu0 %313
    %v317 = vsel %vm289, %v312, 0
    %319 = vmatpush.bf16.msra.mxu0 0
    %320 = vmatpush.bf16.msra.mxu0 0
    %321 = vmatpush.bf16.msra.mxu0 0
    %322 = vmatpush.bf16.msra.mxu0 0
    %323 = vmatpush.bf16.msra.mxu0 0
    %324 = vmatpush.bf16.msra.mxu0 0
    %325 = vmatpush.bf16.msra.mxu0 0
    %326 = vmatpush.bf16.msra.mxu0 %v314
    %327 = vmatmul.bf16.gmra.mxu0 %v317
    %v328 = vpop.f32.mrf.mxu0
    %v329 = vadd.f32 0.0, %v328
    %v330 = vpop.f32.mrf.mxu0
    %v331 = vadd.f32 0.0, %v330
    %332 = vdwg.mxu0
    %333 = vrot.lane.b32.xlu0 %v260, 120
    %v334 = vpop.permute.xlu0 %333
    %335 = vrot.lane.b32.xlu0 %v260, 88
    %v336 = vpop.permute.xlu0 %335
    %v338 = vsel %vm264, %v334, 0
    %v341 = vsel %vm264, %v336, 0
    %343 = vmatpush.bf16.xpose.msra.mxu0 0
    %344 = vmatpush.bf16.xpose.msra.mxu0 0
    %345 = vmatpush.bf16.xpose.msra.mxu0 0
    %346 = vmatpush.bf16.xpose.msra.mxu0 0
    %347 = vmatpush.bf16.xpose.msra.mxu0 0
    %348 = vmatpush.bf16.xpose.msra.mxu0 0
    %349 = vmatpush.bf16.xpose.msra.mxu0 0
    %350 = vmatpush.bf16.xpose.msra.mxu0 %v341
    %351 = vmatmul.bf16.gmra.mxu0 %v338
    %v352 = vpop.f32.mrf.mxu0
    %v353 = vadd.f32 0.0, %v352
    %v354 = vpop.f32.mrf.mxu0
    %v355 = vadd.f32 0.0, %v354
    %356 = vdwg.mxu0
    %v357 = vmul.f32 %v353, 0.35355338
    %v358 = vmul.f32 %v355, 0.35355338
    %v359 = vadd.f32 %v357, %v206
    %v360 = vadd.f32 %v358, %v207
    %v361 = vsel %vm289, %v359, -inf
    %362 = vmax.xlane.f32.xlu0 %v361
    %v363 = vpop.xlane.xlu0 %362
    %v364 = vsel %vm289, %v360, -inf
    %365 = vmax.xlane.f32.xlu0 %v364
    %v366 = vpop.xlane.xlu0 %365
    %v367 = vsub.f32 %v359, %v363
    %v368 = vsub.f32 %v360, %v366
    %v369 = vmul.f32 %v367, 1.442695
    %v370 = vpow.pop %v369
    %v371 = vmul.f32 %v368, 1.442695
    %v372 = vpow.pop %v371
    %v373 = vsel %vm289, %v370, 0.0
    %374 = vadd.xlane.f32.xlu0 %v373
    %v375 = vpop.xlane.xlu0 %374
    %v376 = vsel %vm289, %v372, 0.0
    %377 = vadd.xlane.f32.xlu0 %v376
    %v378 = vpop.xlane.xlu0 %377
    %v379 = vrcp.pop %v375
    %v380 = vrcp.pop %v378
    %v381 = vmul.f32 %v370, %v379
    %v382 = vmul.f32 %v372, %v380
    %v383 = vpack.c.bf16 %v382, %v381
    %384 = vrot.lane.b32.xlu0 %v260, 56
    %v385 = vpop.permute.xlu0 %384
    %v388 = vsel %vm289, %v383, 0
    %390 = vmatpush.bf16.msra.mxu0 0
    %391 = vmatpush.bf16.msra.mxu0 0
    %392 = vmatpush.bf16.msra.mxu0 0
    %393 = vmatpush.bf16.msra.mxu0 0
    %394 = vmatpush.bf16.msra.mxu0 0
    %395 = vmatpush.bf16.msra.mxu0 0
    %396 = vmatpush.bf16.msra.mxu0 0
    %397 = vmatpush.bf16.msra.mxu0 %v385
    %398 = vmatmul.bf16.gmra.mxu0 %v388
    %v399 = vpop.f32.mrf.mxu0
    %v400 = vadd.f32 0.0, %v399
    %v401 = vpop.f32.mrf.mxu0
    %v402 = vadd.f32 0.0, %v401
    %403 = vdwg.mxu0
    %404 = vrot.lane.b32.xlu0 %v260, 112
    %v405 = vpop.permute.xlu0 %404
    %406 = vrot.lane.b32.xlu0 %v260, 80
    %v407 = vpop.permute.xlu0 %406
    %v409 = vsel %vm264, %v405, 0
    %v412 = vsel %vm264, %v407, 0
    %414 = vmatpush.bf16.xpose.msra.mxu0 0
    %415 = vmatpush.bf16.xpose.msra.mxu0 0
    %416 = vmatpush.bf16.xpose.msra.mxu0 0
    %417 = vmatpush.bf16.xpose.msra.mxu0 0
    %418 = vmatpush.bf16.xpose.msra.mxu0 0
    %419 = vmatpush.bf16.xpose.msra.mxu0 0
    %420 = vmatpush.bf16.xpose.msra.mxu0 0
    %421 = vmatpush.bf16.xpose.msra.mxu0 %v412
    %422 = vmatmul.bf16.gmra.mxu0 %v409
    %v423 = vpop.f32.mrf.mxu0
    %v424 = vadd.f32 0.0, %v423
    %v425 = vpop.f32.mrf.mxu0
    %v426 = vadd.f32 0.0, %v425
    %427 = vdwg.mxu0
    %v428 = vmul.f32 %v424, 0.35355338
    %v429 = vmul.f32 %v426, 0.35355338
    %v430 = vadd.f32 %v428, %v206
    %v431 = vadd.f32 %v429, %v207
    %v432 = vsel %vm289, %v430, -inf
    %433 = vmax.xlane.f32.xlu0 %v432
    %v434 = vpop.xlane.xlu0 %433
    %v435 = vsel %vm289, %v431, -inf
    %436 = vmax.xlane.f32.xlu0 %v435
    %v437 = vpop.xlane.xlu0 %436
    %v438 = vsub.f32 %v430, %v434
    %v439 = vsub.f32 %v431, %v437
    %v440 = vmul.f32 %v438, 1.442695
    %v441 = vpow.pop %v440
    %v442 = vmul.f32 %v439, 1.442695
    %v443 = vpow.pop %v442
    %v444 = vsel %vm289, %v441, 0.0
    %445 = vadd.xlane.f32.xlu0 %v444
    %v446 = vpop.xlane.xlu0 %445
    %v447 = vsel %vm289, %v443, 0.0
    %448 = vadd.xlane.f32.xlu0 %v447
    %v449 = vpop.xlane.xlu0 %448
    %v450 = vrcp.pop %v446
    %v451 = vrcp.pop %v449
    %v452 = vmul.f32 %v441, %v450
    %v453 = vmul.f32 %v443, %v451
    %v454 = vpack.c.bf16 %v453, %v452
    %455 = vrot.lane.b32.xlu0 %v260, 48
    %v456 = vpop.permute.xlu0 %455
    %v459 = vsel %vm289, %v454, 0
    %461 = vmatpush.bf16.msra.mxu0 0
    %462 = vmatpush.bf16.msra.mxu0 0
    %463 = vmatpush.bf16.msra.mxu0 0
    %464 = vmatpush.bf16.msra.mxu0 0
    %465 = vmatpush.bf16.msra.mxu0 0
    %466 = vmatpush.bf16.msra.mxu0 0
    %467 = vmatpush.bf16.msra.mxu0 0
    %468 = vmatpush.bf16.msra.mxu0 %v456
    %469 = vmatmul.bf16.gmra.mxu0 %v459
    %v470 = vpop.f32.mrf.mxu0
    %v471 = vadd.f32 0.0, %v470
    %v472 = vpop.f32.mrf.mxu0
    %v473 = vadd.f32 0.0, %v472
    %474 = vdwg.mxu0
    %475 = vrot.lane.b32.xlu0 %v260, 104
    %v476 = vpop.permute.xlu0 %475
    %477 = vrot.lane.b32.xlu0 %v260, 72
    %v478 = vpop.permute.xlu0 %477
    %v480 = vsel %vm264, %v476, 0
    %v483 = vsel %vm264, %v478, 0
    %485 = vmatpush.bf16.xpose.msra.mxu0 0
    %486 = vmatpush.bf16.xpose.msra.mxu0 0
    %487 = vmatpush.bf16.xpose.msra.mxu0 0
    %488 = vmatpush.bf16.xpose.msra.mxu0 0
    %489 = vmatpush.bf16.xpose.msra.mxu0 0
    %490 = vmatpush.bf16.xpose.msra.mxu0 0
    %491 = vmatpush.bf16.xpose.msra.mxu0 0
    %492 = vmatpush.bf16.xpose.msra.mxu0 %v483
    %493 = vmatmul.bf16.gmra.mxu0 %v480
    %v494 = vpop.f32.mrf.mxu0
    %v495 = vadd.f32 0.0, %v494
    %v496 = vpop.f32.mrf.mxu0
    %v497 = vadd.f32 0.0, %v496
    %498 = vdwg.mxu0
    %v499 = vmul.f32 %v495, 0.35355338
    %v500 = vmul.f32 %v497, 0.35355338
    %v501 = vadd.f32 %v499, %v206
    %v502 = vadd.f32 %v500, %v207
    %v503 = vsel %vm289, %v501, -inf
    %504 = vmax.xlane.f32.xlu0 %v503
    %v505 = vpop.xlane.xlu0 %504
    %v506 = vsel %vm289, %v502, -inf
    %507 = vmax.xlane.f32.xlu0 %v506
    %v508 = vpop.xlane.xlu0 %507
    %v509 = vsub.f32 %v501, %v505
    %v510 = vsub.f32 %v502, %v508
    %v511 = vmul.f32 %v509, 1.442695
    %v512 = vpow.pop %v511
    %v513 = vmul.f32 %v510, 1.442695
    %v514 = vpow.pop %v513
    %v515 = vsel %vm289, %v512, 0.0
    %516 = vadd.xlane.f32.xlu0 %v515
    %v517 = vpop.xlane.xlu0 %516
    %v518 = vsel %vm289, %v514, 0.0
    %519 = vadd.xlane.f32.xlu0 %v518
    %v520 = vpop.xlane.xlu0 %519
    %v521 = vrcp.pop %v517
    %v522 = vrcp.pop %v520
    %v523 = vmul.f32 %v512, %v521
    %v524 = vmul.f32 %v514, %v522
    %v525 = vpack.c.bf16 %v524, %v523
    %526 = vrot.lane.b32.xlu0 %v260, 40
    %v527 = vpop.permute.xlu0 %526
    %v530 = vsel %vm289, %v525, 0
    %532 = vmatpush.bf16.msra.mxu0 0
    %533 = vmatpush.bf16.msra.mxu0 0
    %534 = vmatpush.bf16.msra.mxu0 0
    %535 = vmatpush.bf16.msra.mxu0 0
    %536 = vmatpush.bf16.msra.mxu0 0
    %537 = vmatpush.bf16.msra.mxu0 0
    %538 = vmatpush.bf16.msra.mxu0 0
    %539 = vmatpush.bf16.msra.mxu0 %v527
    %540 = vmatmul.bf16.gmra.mxu0 %v530
    %v541 = vpop.f32.mrf.mxu0
    %v542 = vadd.f32 0.0, %v541
    %v543 = vpop.f32.mrf.mxu0
    %v544 = vadd.f32 0.0, %v543
    %545 = vdwg.mxu0
    %548 = vrot.lane.b32.xlu0 %v400, 8
    %v549 = vpop.permute.xlu0 %548
    %550 = vrot.lane.b32.xlu0 %v402, 8
    %v551 = vpop.permute.xlu0 %550
    %556 = vrot.lane.b32.xlu0 %v471, 16
    %v557 = vpop.permute.xlu0 %556
    %558 = vrot.lane.b32.xlu0 %v473, 16
    %v559 = vpop.permute.xlu0 %558
    %564 = vrot.lane.b32.xlu0 %v542, 24
    %v565 = vpop.permute.xlu0 %564
    %566 = vrot.lane.b32.xlu0 %v544, 24
    %v567 = vpop.permute.xlu0 %566
    %v570 = vsel %vm264, %v329, %v549
    %v571 = vsel %vm264, %v331, %v551
    %v572 = vsel %vm289, %v570, %v557
    %v573 = vsel %vm289, %v571, %v559
    %vm574 = vcmask 195584
    %v575 = vsel %vm574, %v572, %v565
    %v576 = vsel %vm574, %v573, %v567
    %v577 = vpack.c.bf16 %v576, %v575
    %v578 = vld [vmem:[#allocation2 + $0x1] sm:$0x1]
    %v579 = vperm.slane %v578, 0
    %v584 = vunpack.c.l.b16 %v212
    %v585 = vunpack.c.l.b16 %v213
    %v586 = vunpack.c.l.b16 %v214
    %v587 = vunpack.c.l.b16 %v215
    %v588 = vpack.c.b16 %v585, %v584
    %v589 = vpack.c.b16 %v587, %v586
    %v593 = vsel %vm83, %v577, 0
    %595 = vmatpush.bf16.msra.mxu0 0
    %596 = vmatpush.bf16.msra.mxu0 0
    %597 = vmatpush.bf16.msra.mxu0 0
    %598 = vmatpush.bf16.msra.mxu0 0
    %599 = vmatpush.bf16.msra.mxu0 0
    %600 = vmatpush.bf16.msra.mxu0 0
    %601 = vmatpush.bf16.msra.mxu0 %v589
    %602 = vmatpush.bf16.msra.mxu0 %v588
    %603 = vmatmul.bf16.gmra.mxu0 %v593
    %v604 = vpop.f32.mrf.mxu0
    %v605 = vadd.f32 %v579, %v604
    %v606 = vpop.f32.mrf.mxu0
    %v607 = vadd.f32 %v579, %v606
    %608 = vdwg.mxu0
    %v609 = vadd.f32 %v204, %v605
    %v610 = vadd.f32 %v205, %v607
    %v611 = vld [vmem:[#allocation2 + $0x2] sm:$0x1]
    %v612 = vld [vmem:[#allocation2 + $0x3] sm:$0x1]
    %v613 = vsel %vm83, %v609, 0.0
    %614 = vadd.xlane.f32.xlu0 %v613
    %v615 = vpop.xlane.xlu0 %614
    %v616 = vsel %vm83, %v610, 0.0
    %617 = vadd.xlane.f32.xlu0 %v616
    %v618 = vpop.xlane.xlu0 %617
    %v619 = vmul.f32 %v615, %v161
    %v620 = vmul.f32 %v618, %v161
    %v621 = vsub.f32 %v609, %v619
    %v622 = vsub.f32 %v610, %v620
    %v623 = vmul.f32 %v621, %v621
    %v624 = vmul.f32 %v622, %v622
    %v625 = vsel %vm83, %v623, 0.0
    %626 = vadd.xlane.f32.xlu0 %v625
    %v627 = vpop.xlane.xlu0 %626
    %v628 = vsel %vm83, %v624, 0.0
    %629 = vadd.xlane.f32.xlu0 %v628
    %v630 = vpop.xlane.xlu0 %629
    %v631 = vmul.f32 %v627, %v161
    %v632 = vmul.f32 %v630, %v161
    %v633 = vadd.f32 %v631, 1e-05
    %v634 = vadd.f32 %v632, 1e-05
    %v635 = vrsqrt.pop %v633
    %v636 = vmul.f32 %v635, %v633
    %v637 = vmul.f32 %v636, %v635
    %v638 = vmul.f32 0.5, %v637
    %v639 = vsub.f32 1.5, %v638
    %v640 = vmul.f32 %v635, %v639
    %vm641 = vweird.f32 %v633
    %vm642 = vweird.f32 %v635
    %vm643 = vmor %vm641, %vm642
    %v644 = vsel %vm643, %v635, %v640
    %v645 = vrsqrt.pop %v634
    %v646 = vmul.f32 %v645, %v634
    %v647 = vmul.f32 %v646, %v645
    %v648 = vmul.f32 0.5, %v647
    %v649 = vsub.f32 1.5, %v648
    %v650 = vmul.f32 %v645, %v649
    %vm651 = vweird.f32 %v634
    %vm652 = vweird.f32 %v645
    %vm653 = vmor %vm651, %vm652
    %v654 = vsel %vm653, %v645, %v650
    %v655 = vmul.f32 %v621, %v644
    %v656 = vmul.f32 %v622, %v654
    %v657 = vperm.slane %v611, 0
    %v658 = vmul.f32 %v655, %v657
    %v659 = vmul.f32 %v656, %v657
    %v660 = vperm.slane %v612, 0
    %v661 = vadd.f32 %v658, %v660
    %v662 = vadd.f32 %v659, %v660
    %v663 = vpack.c.bf16 %v662, %v661
    %v664 = vld [vmem:[#allocation2 + $0x4] sm:$0x1]
    %v665 = vperm.slane %v664, 0
    %v670 = vunpack.c.l.b16 %v216
    %v671 = vunpack.c.l.b16 %v217
    %v672 = vunpack.c.l.b16 %v218
    %v673 = vunpack.c.l.b16 %v219
    %v674 = vpack.c.b16 %v671, %v670
    %v675 = vpack.c.b16 %v673, %v672
    %v679 = vsel %vm83, %v663, 0
    %681 = vmatpush.bf16.msra.mxu0 0
    %682 = vmatpush.bf16.msra.mxu0 0
    %683 = vmatpush.bf16.msra.mxu0 0
    %684 = vmatpush.bf16.msra.mxu0 0
    %685 = vmatpush.bf16.msra.mxu0 0
    %686 = vmatpush.bf16.msra.mxu0 0
    %687 = vmatpush.bf16.msra.mxu0 %v675
    %688 = vmatpush.bf16.msra.mxu0 %v674
    %689 = vmatmul.bf16.gmra.mxu0 %v679
    %v690 = vpop.f32.mrf.mxu0
    %v691 = vadd.f32 %v665, %v690
    %v692 = vpop.f32.mrf.mxu0
    %v693 = vadd.f32 %v665, %v692
    %694 = vdwg.mxu0
    %v695 = vmul.f32 %v691, 0.5
    %v696 = vmul.f32 %v693, 0.5
    %v697 = vmul.f32 %v691, 0.044715
    %v698 = vmul.f32 %v693, 0.044715
    %v699 = vmul.f32 %v697, %v691
    %v700 = vmul.f32 %v698, %v693
    %v701 = vmul.f32 %v699, %v691
    %v702 = vmul.f32 %v700, %v693
    %v703 = vadd.f32 %v691, %v701
    %v704 = vadd.f32 %v693, %v702
    %v705 = vmul.f32 %v703, 0.7978846
    %v706 = vmul.f32 %v704, 0.7978846
    %v707 = vtanh.pop %v705
    %v708 = vtanh.pop %v706
    %v709 = vadd.f32 %v707, 1.0
    %v710 = vadd.f32 %v708, 1.0
    %v711 = vmul.f32 %v695, %v709
    %v712 = vmul.f32 %v696, %v710
    %v713 = vpack.c.bf16 %v712, %v711
    %v714 = vld [vmem:[#allocation2 + $0x5] sm:$0x1]
    %v715 = vperm.slane %v714, 0
    %v724 = vunpack.c.l.b16 %v220
    %v725 = vunpack.c.l.b16 %v221
    %v726 = vunpack.c.l.b16 %v222
    %v727 = vunpack.c.l.b16 %v223
    %v728 = vunpack.c.l.b16 %v224
    %v729 = vunpack.c.l.b16 %v225
    %v730 = vunpack.c.l.b16 %v226
    %v731 = vunpack.c.l.b16 %v227
    %v732 = vpack.c.b16 %v725, %v724
    %v733 = vpack.c.b16 %v727, %v726
    %v734 = vpack.c.b16 %v729, %v728
    %v735 = vpack.c.b16 %v731, %v730
    %vm740 = vcmask 523264
    %v742 = vsel %vm740, %v713, 0
    %744 = vmatpush.bf16.msra.mxu0 0
    %745 = vmatpush.bf16.msra.mxu0 0
    %746 = vmatpush.bf16.msra.mxu0 0
    %747 = vmatpush.bf16.msra.mxu0 0
    %748 = vmatpush.bf16.msra.mxu0 %v735
    %749 = vmatpush.bf16.msra.mxu0 %v734
    %750 = vmatpush.bf16.msra.mxu0 %v733
    %751 = vmatpush.bf16.msra.mxu0 %v732
    %752 = vmatmul.bf16.gmra.mxu0 %v742
    %v753 = vpop.f32.mrf.mxu0
    %v754 = vadd.f32 %v715, %v753
    %v755 = vpop.f32.mrf.mxu0
    %v756 = vadd.f32 %v715, %v755
    %757 = vdwg.mxu0
    %v758 = vadd.f32 %v661, %v754
    %v759 = vadd.f32 %v662, %v756
    %v760 = vld [vmem:[#allocation2 + $0x6] sm:$0x1]
    %v761 = vld [vmem:[#allocation2 + $0x7] sm:$0x1]
    %v762 = vsel %vm83, %v758, 0.0
    %763 = vadd.xlane.f32.xlu0 %v762
    %v764 = vpop.xlane.xlu0 %763
    %v765 = vsel %vm83, %v759, 0.0
    %766 = vadd.xlane.f32.xlu0 %v765
    %v767 = vpop.xlane.xlu0 %766
    %v768 = vmul.f32 %v764, %v161
    %v769 = vmul.f32 %v767, %v161
    %v770 = vsub.f32 %v758, %v768
    %v771 = vsub.f32 %v759, %v769
    %v772 = vmul.f32 %v770, %v770
    %v773 = vmul.f32 %v771, %v771
    %v774 = vsel %vm83, %v772, 0.0
    %775 = vadd.xlane.f32.xlu0 %v774
    %v776 = vpop.xlane.xlu0 %775
    %v777 = vsel %vm83, %v773, 0.0
    %778 = vadd.xlane.f32.xlu0 %v777
    %v779 = vpop.xlane.xlu0 %778
    %v780 = vmul.f32 %v776, %v161
    %v781 = vmul.f32 %v779, %v161
    %v782 = vadd.f32 %v780, 1e-05
    %v783 = vadd.f32 %v781, 1e-05
    %v784 = vrsqrt.pop %v782
    %v785 = vmul.f32 %v784, %v782
    %v786 = vmul.f32 %v785, %v784
    %v787 = vmul.f32 0.5, %v786
    %v788 = vsub.f32 1.5, %v787
    %v789 = vmul.f32 %v784, %v788
    %vm790 = vweird.f32 %v782
    %vm791 = vweird.f32 %v784
    %vm792 = vmor %vm790, %vm791
    %v793 = vsel %vm792, %v784, %v789
    %v794 = vrsqrt.pop %v783
    %v795 = vmul.f32 %v794, %v783
    %v796 = vmul.f32 %v795, %v794
    %v797 = vmul.f32 0.5, %v796
    %v798 = vsub.f32 1.5, %v797
    %v799 = vmul.f32 %v794, %v798
    %vm800 = vweird.f32 %v783
    %vm801 = vweird.f32 %v794
    %vm802 = vmor %vm800, %vm801
    %v803 = vsel %vm802, %v794, %v799
    %v804 = vmul.f32 %v770, %v793
    %v805 = vmul.f32 %v771, %v803
    %v806 = vperm.slane %v760, 0
    %v807 = vmul.f32 %v804, %v806
    %v808 = vmul.f32 %v805, %v806
    %v809 = vperm.slane %v761, 0
    %v810 = vadd.f32 %v807, %v809
    %v811 = vadd.f32 %v808, %v809
    %v812 = vld [vmem:[%s3 + $0x50] sm:$0xf]
    %v813 = vld [vmem:[%s3 + $0x54] sm:$0xf]
    %v814 = vld [vmem:[%s3 + $0x58] sm:$0xf]
    %v815 = vld [vmem:[%s3 + $0x5c] sm:$0xf]
    %v816 = vld [vmem:[%s3 + $0x60] sm:$0xf]
    %v817 = vld [vmem:[%s3 + $0x64] sm:$0xf]
    %v818 = vld [vmem:[%s3 + $0x68] sm:$0xf]
    %v819 = vld [vmem:[%s3 + $0x6c] sm:$0xf]
    %v820 = vld [vmem:[%s3 + $0x70] sm:$0xf]
    %v821 = vld [vmem:[%s3 + $0x74] sm:$0xf]
    %v822 = vld [vmem:[%s3 + $0x78] sm:$0xf]
    %v823 = vld [vmem:[%s3 + $0x7c] sm:$0xf]
    %v824 = vld [vmem:[%s3 + $0x80] sm:$0xf]
    %v825 = vld [vmem:[%s3 + $0x84] sm:$0xf]
    %v826 = vld [vmem:[%s3 + $0x88] sm:$0xf]
    %v827 = vld [vmem:[%s3 + $0x8c] sm:$0xf]
    %v828 = vld [vmem:[%s3 + $0x90] sm:$0xf]
    %v829 = vld [vmem:[%s3 + $0x94] sm:$0xf]
    %v830 = vld [vmem:[%s3 + $0x98] sm:$0xf]
    %v831 = vld [vmem:[%s3 + $0x9c] sm:$0xf]
    %v832 = vpack.c.bf16 %v811, %v810
    %v833 = vld [vmem:[#allocation2 + $0x8] sm:$0x1]
    %v834 = vperm.slane %v833, 0
    %v839 = vunpack.c.l.b16 %v812
    %v840 = vunpack.c.l.b16 %v813
    %v841 = vunpack.c.l.b16 %v814
    %v842 = vunpack.c.l.b16 %v815
    %v843 = vpack.c.b16 %v840, %v839
    %v844 = vpack.c.b16 %v842, %v841
    %v848 = vsel %vm83, %v832, 0
    %850 = vmatpush.bf16.msra.mxu0 0
    %851 = vmatpush.bf16.msra.mxu0 0
    %852 = vmatpush.bf16.msra.mxu0 0
    %853 = vmatpush.bf16.msra.mxu0 0
    %854 = vmatpush.bf16.msra.mxu0 0
    %855 = vmatpush.bf16.msra.mxu0 0
    %856 = vmatpush.bf16.msra.mxu0 %v844
    %857 = vmatpush.bf16.msra.mxu0 %v843
    %858 = vmatmul.bf16.gmra.mxu0 %v848
    %v859 = vpop.f32.mrf.mxu0
    %v860 = vadd.f32 %v834, %v859
    %v861 = vpop.f32.mrf.mxu0
    %v862 = vadd.f32 %v834, %v861
    %863 = vdwg.mxu0
    %v864 = vpack.c.bf16 %v862, %v860
    %866 = vrot.lane.b32.xlu0 %v864, 96
    %v867 = vpop.permute.xlu0 %866
    %v869 = vsel %vm264, %v864, 0
    %v872 = vsel %vm264, %v867, 0
    %874 = vmatpush.bf16.xpose.msra.mxu0 0
    %875 = vmatpush.bf16.xpose.msra.mxu0 0
    %876 = vmatpush.bf16.xpose.msra.mxu0 0
    %877 = vmatpush.bf16.xpose.msra.mxu0 0
    %878 = vmatpush.bf16.xpose.msra.mxu0 0
    %879 = vmatpush.bf16.xpose.msra.mxu0 0
    %880 = vmatpush.bf16.xpose.msra.mxu0 0
    %881 = vmatpush.bf16.xpose.msra.mxu0 %v872
    %882 = vmatmul.bf16.gmra.mxu0 %v869
    %v883 = vpop.f32.mrf.mxu0
    %v884 = vadd.f32 0.0, %v883
    %v885 = vpop.f32.mrf.mxu0
    %v886 = vadd.f32 0.0, %v885
    %887 = vdwg.mxu0
    %v888 = vmul.f32 %v884, 0.35355338
    %v889 = vmul.f32 %v886, 0.35355338
    %v890 = vadd.f32 %v888, %v206
    %v891 = vadd.f32 %v889, %v207
    %v892 = vsel %vm289, %v890, -inf
    %893 = vmax.xlane.f32.xlu0 %v892
    %v894 = vpop.xlane.xlu0 %893
    %v895 = vsel %vm289, %v891, -inf
    %896 = vmax.xlane.f32.xlu0 %v895
    %v897 = vpop.xlane.xlu0 %896
    %v898 = vsub.f32 %v890, %v894
    %v899 = vsub.f32 %v891, %v897
    %v900 = vmul.f32 %v898, 1.442695
    %v901 = vpow.pop %v900
    %v902 = vmul.f32 %v899, 1.442695
    %v903 = vpow.pop %v902
    %v904 = vsel %vm289, %v901, 0.0
    %905 = vadd.xlane.f32.xlu0 %v904
    %v906 = vpop.xlane.xlu0 %905
    %v907 = vsel %vm289, %v903, 0.0
    %908 = vadd.xlane.f32.xlu0 %v907
    %v909 = vpop.xlane.xlu0 %908
    %v910 = vrcp.pop %v906
    %v911 = vrcp.pop %v909
    %v912 = vmul.f32 %v901, %v910
    %v913 = vmul.f32 %v903, %v911
    %v914 = vpack.c.bf16 %v913, %v912
    %915 = vrot.lane.b32.xlu0 %v864, 64
    %v916 = vpop.permute.xlu0 %915
    %v919 = vsel %vm289, %v914, 0
    %921 = vmatpush.bf16.msra.mxu0 0
    %922 = vmatpush.bf16.msra.mxu0 0
    %923 = vmatpush.bf16.msra.mxu0 0
    %924 = vmatpush.bf16.msra.mxu0 0
    %925 = vmatpush.bf16.msra.mxu0 0
    %926 = vmatpush.bf16.msra.mxu0 0
    %927 = vmatpush.bf16.msra.mxu0 0
    %928 = vmatpush.bf16.msra.mxu0 %v916
    %929 = vmatmul.bf16.gmra.mxu0 %v919
    %v930 = vpop.f32.mrf.mxu0
    %v931 = vadd.f32 0.0, %v930
    %v932 = vpop.f32.mrf.mxu0
    %v933 = vadd.f32 0.0, %v932
    %934 = vdwg.mxu0
    %935 = vrot.lane.b32.xlu0 %v864, 120
    %v936 = vpop.permute.xlu0 %935
    %937 = vrot.lane.b32.xlu0 %v864, 88
    %v938 = vpop.permute.xlu0 %937
    %v940 = vsel %vm264, %v936, 0
    %v943 = vsel %vm264, %v938, 0
    %945 = vmatpush.bf16.xpose.msra.mxu0 0
    %946 = vmatpush.bf16.xpose.msra.mxu0 0
    %947 = vmatpush.bf16.xpose.msra.mxu0 0
    %948 = vmatpush.bf16.xpose.msra.mxu0 0
    %949 = vmatpush.bf16.xpose.msra.mxu0 0
    %950 = vmatpush.bf16.xpose.msra.mxu0 0
    %951 = vmatpush.bf16.xpose.msra.mxu0 0
    %952 = vmatpush.bf16.xpose.msra.mxu0 %v943
    %953 = vmatmul.bf16.gmra.mxu0 %v940
    %v954 = vpop.f32.mrf.mxu0
    %v955 = vadd.f32 0.0, %v954
    %v956 = vpop.f32.mrf.mxu0
    %v957 = vadd.f32 0.0, %v956
    %958 = vdwg.mxu0
    %v959 = vmul.f32 %v955, 0.35355338
    %v960 = vmul.f32 %v957, 0.35355338
    %v961 = vadd.f32 %v959, %v206
    %v962 = vadd.f32 %v960, %v207
    %v963 = vsel %vm289, %v961, -inf
    %964 = vmax.xlane.f32.xlu0 %v963
    %v965 = vpop.xlane.xlu0 %964
    %v966 = vsel %vm289, %v962, -inf
    %967 = vmax.xlane.f32.xlu0 %v966
    %v968 = vpop.xlane.xlu0 %967
    %v969 = vsub.f32 %v961, %v965
    %v970 = vsub.f32 %v962, %v968
    %v971 = vmul.f32 %v969, 1.442695
    %v972 = vpow.pop %v971
    %v973 = vmul.f32 %v970, 1.442695
    %v974 = vpow.pop %v973
    %v975 = vsel %vm289, %v972, 0.0
    %976 = vadd.xlane.f32.xlu0 %v975
    %v977 = vpop.xlane.xlu0 %976
    %v978 = vsel %vm289, %v974, 0.0
    %979 = vadd.xlane.f32.xlu0 %v978
    %v980 = vpop.xlane.xlu0 %979
    %v981 = vrcp.pop %v977
    %v982 = vrcp.pop %v980
    %v983 = vmul.f32 %v972, %v981
    %v984 = vmul.f32 %v974, %v982
    %v985 = vpack.c.bf16 %v984, %v983
    %986 = vrot.lane.b32.xlu0 %v864, 56
    %v987 = vpop.permute.xlu0 %986
    %v990 = vsel %vm289, %v985, 0
    %992 = vmatpush.bf16.msra.mxu0 0
    %993 = vmatpush.bf16.msra.mxu0 0
    %994 = vmatpush.bf16.msra.mxu0 0
    %995 = vmatpush.bf16.msra.mxu0 0
    %996 = vmatpush.bf16.msra.mxu0 0
    %997 = vmatpush.bf16.msra.mxu0 0
    %998 = vmatpush.bf16.msra.mxu0 0
    %999 = vmatpush.bf16.msra.mxu0 %v987
    %1000 = vmatmul.bf16.gmra.mxu0 %v990
    %v1001 = vpop.f32.mrf.mxu0
    %v1002 = vadd.f32 0.0, %v1001
    %v1003 = vpop.f32.mrf.mxu0
    %v1004 = vadd.f32 0.0, %v1003
    %1005 = vdwg.mxu0
    %1006 = vrot.lane.b32.xlu0 %v864, 112
    %v1007 = vpop.permute.xlu0 %1006
    %1008 = vrot.lane.b32.xlu0 %v864, 80
    %v1009 = vpop.permute.xlu0 %1008
    %v1011 = vsel %vm264, %v1007, 0
    %v1014 = vsel %vm264, %v1009, 0
    %1016 = vmatpush.bf16.xpose.msra.mxu0 0
    %1017 = vmatpush.bf16.xpose.msra.mxu0 0
    %1018 = vmatpush.bf16.xpose.msra.mxu0 0
    %1019 = vmatpush.bf16.xpose.msra.mxu0 0
    %1020 = vmatpush.bf16.xpose.msra.mxu0 0
    %1021 = vmatpush.bf16.xpose.msra.mxu0 0
    %1022 = vmatpush.bf16.xpose.msra.mxu0 0
    %1023 = vmatpush.bf16.xpose.msra.mxu0 %v1014
    %1024 = vmatmul.bf16.gmra.mxu0 %v1011
    %v1025 = vpop.f32.mrf.mxu0
    %v1026 = vadd.f32 0.0, %v1025
    %v1027 = vpop.f32.mrf.mxu0
    %v1028 = vadd.f32 0.0, %v1027
    %1029 = vdwg.mxu0
    %v1030 = vmul.f32 %v1026, 0.35355338
    %v1031 = vmul.f32 %v1028, 0.35355338
    %v1032 = vadd.f32 %v1030, %v206
    %v1033 = vadd.f32 %v1031, %v207
    %v1034 = vsel %vm289, %v1032, -inf
    %1035 = vmax.xlane.f32.xlu0 %v1034
    %v1036 = vpop.xlane.xlu0 %1035
    %v1037 = vsel %vm289, %v1033, -inf
    %1038 = vmax.xlane.f32.xlu0 %v1037
    %v1039 = vpop.xlane.xlu0 %1038
    %v1040 = vsub.f32 %v1032, %v1036
    %v1041 = vsub.f32 %v1033, %v1039
    %v1042 = vmul.f32 %v1040, 1.442695
    %v1043 = vpow.pop %v1042
    %v1044 = vmul.f32 %v1041, 1.442695
    %v1045 = vpow.pop %v1044
    %v1046 = vsel %vm289, %v1043, 0.0
    %1047 = vadd.xlane.f32.xlu0 %v1046
    %v1048 = vpop.xlane.xlu0 %1047
    %v1049 = vsel %vm289, %v1045, 0.0
    %1050 = vadd.xlane.f32.xlu0 %v1049
    %v1051 = vpop.xlane.xlu0 %1050
    %v1052 = vrcp.pop %v1048
    %v1053 = vrcp.pop %v1051
    %v1054 = vmul.f32 %v1043, %v1052
    %v1055 = vmul.f32 %v1045, %v1053
    %v1056 = vpack.c.bf16 %v1055, %v1054
    %1057 = vrot.lane.b32.xlu0 %v864, 48
    %v1058 = vpop.permute.xlu0 %1057
    %v1061 = vsel %vm289, %v1056, 0
    %1063 = vmatpush.bf16.msra.mxu0 0
    %1064 = vmatpush.bf16.msra.mxu0 0
    %1065 = vmatpush.bf16.msra.mxu0 0
    %1066 = vmatpush.bf16.msra.mxu0 0
    %1067 = vmatpush.bf16.msra.mxu0 0
    %1068 = vmatpush.bf16.msra.mxu0 0
    %1069 = vmatpush.bf16.msra.mxu0 0
    %1070 = vmatpush.bf16.msra.mxu0 %v1058
    %1071 = vmatmul.bf16.gmra.mxu0 %v1061
    %v1072 = vpop.f32.mrf.mxu0
    %v1073 = vadd.f32 0.0, %v1072
    %v1074 = vpop.f32.mrf.mxu0
    %v1075 = vadd.f32 0.0, %v1074
    %1076 = vdwg.mxu0
    %1077 = vrot.lane.b32.xlu0 %v864, 104
    %v1078 = vpop.permute.xlu0 %1077
    %1079 = vrot.lane.b32.xlu0 %v864, 72
    %v1080 = vpop.permute.xlu0 %1079
    %v1082 = vsel %vm264, %v1078, 0
    %v1085 = vsel %vm264, %v1080, 0
    %1087 = vmatpush.bf16.xpose.msra.mxu0 0
    %1088 = vmatpush.bf16.xpose.msra.mxu0 0
    %1089 = vmatpush.bf16.xpose.msra.mxu0 0
    %1090 = vmatpush.bf16.xpose.msra.mxu0 0
    %1091 = vmatpush.bf16.xpose.msra.mxu0 0
    %1092 = vmatpush.bf16.xpose.msra.mxu0 0
    %1093 = vmatpush.bf16.xpose.msra.mxu0 0
    %1094 = vmatpush.bf16.xpose.msra.mxu0 %v1085
    %1095 = vmatmul.bf16.gmra.mxu0 %v1082
    %v1096 = vpop.f32.mrf.mxu0
    %v1097 = vadd.f32 0.0, %v1096
    %v1098 = vpop.f32.mrf.mxu0
    %v1099 = vadd.f32 0.0, %v1098
    %1100 = vdwg.mxu0
    %v1101 = vmul.f32 %v1097, 0.35355338
    %v1102 = vmul.f32 %v1099, 0.35355338
    %v1103 = vadd.f32 %v1101, %v206
    %v1104 = vadd.f32 %v1102, %v207
    %v1105 = vsel %vm289, %v1103, -inf
    %1106 = vmax.xlane.f32.xlu0 %v1105
    %v1107 = vpop.xlane.xlu0 %1106
    %v1108 = vsel %vm289, %v1104, -inf
    %1109 = vmax.xlane.f32.xlu0 %v1108
    %v1110 = vpop.xlane.xlu0 %1109
    %v1111 = vsub.f32 %v1103, %v1107
    %v1112 = vsub.f32 %v1104, %v1110
    %v1113 = vmul.f32 %v1111, 1.442695
    %v1114 = vpow.pop %v1113
    %v1115 = vmul.f32 %v1112, 1.442695
    %v1116 = vpow.pop %v1115
    %v1117 = vsel %vm289, %v1114, 0.0
    %1118 = vadd.xlane.f32.xlu0 %v1117
    %v1119 = vpop.xlane.xlu0 %1118
    %v1120 = vsel %vm289, %v1116, 0.0
    %1121 = vadd.xlane.f32.xlu0 %v1120
    %v1122 = vpop.xlane.xlu0 %1121
    %v1123 = vrcp.pop %v1119
    %v1124 = vrcp.pop %v1122
    %v1125 = vmul.f32 %v1114, %v1123
    %v1126 = vmul.f32 %v1116, %v1124
    %v1127 = vpack.c.bf16 %v1126, %v1125
    %1128 = vrot.lane.b32.xlu0 %v864, 40
    %v1129 = vpop.permute.xlu0 %1128
    %v1132 = vsel %vm289, %v1127, 0
    %1134 = vmatpush.bf16.msra.mxu0 0
    %1135 = vmatpush.bf16.msra.mxu0 0
    %1136 = vmatpush.bf16.msra.mxu0 0
    %1137 = vmatpush.bf16.msra.mxu0 0
    %1138 = vmatpush.bf16.msra.mxu0 0
    %1139 = vmatpush.bf16.msra.mxu0 0
    %1140 = vmatpush.bf16.msra.mxu0 0
    %1141 = vmatpush.bf16.msra.mxu0 %v1129
    %1142 = vmatmul.bf16.gmra.mxu0 %v1132
    %v1143 = vpop.f32.mrf.mxu0
    %v1144 = vadd.f32 0.0, %v1143
    %v1145 = vpop.f32.mrf.mxu0
    %v1146 = vadd.f32 0.0, %v1145
    %1147 = vdwg.mxu0
    %1150 = vrot.lane.b32.xlu0 %v1002, 8
    %v1151 = vpop.permute.xlu0 %1150
    %1152 = vrot.lane.b32.xlu0 %v1004, 8
    %v1153 = vpop.permute.xlu0 %1152
    %1158 = vrot.lane.b32.xlu0 %v1073, 16
    %v1159 = vpop.permute.xlu0 %1158
    %1160 = vrot.lane.b32.xlu0 %v1075, 16
    %v1161 = vpop.permute.xlu0 %1160
    %1166 = vrot.lane.b32.xlu0 %v1144, 24
    %v1167 = vpop.permute.xlu0 %1166
    %1168 = vrot.lane.b32.xlu0 %v1146, 24
    %v1169 = vpop.permute.xlu0 %1168
    %v1172 = vsel %vm264, %v931, %v1151
    %v1173 = vsel %vm264, %v933, %v1153
    %v1174 = vsel %vm289, %v1172, %v1159
    %v1175 = vsel %vm289, %v1173, %v1161
    %v1176 = vsel %vm574, %v1174, %v1167
    %v1177 = vsel %vm574, %v1175, %v1169
    %v1178 = vpack.c.bf16 %v1177, %v1176
    %v1179 = vld [vmem:[#allocation2 + $0x9] sm:$0x1]
    %v1180 = vperm.slane %v1179, 0
    %v1185 = vunpack.c.l.b16 %v816
    %v1186 = vunpack.c.l.b16 %v817
    %v1187 = vunpack.c.l.b16 %v818
    %v1188 = vunpack.c.l.b16 %v819
    %v1189 = vpack.c.b16 %v1186, %v1185
    %v1190 = vpack.c.b16 %v1188, %v1187
    %v1194 = vsel %vm83, %v1178, 0
    %1196 = vmatpush.bf16.msra.mxu0 0
    %1197 = vmatpush.bf16.msra.mxu0 0
    %1198 = vmatpush.bf16.msra.mxu0 0
    %1199 = vmatpush.bf16.msra.mxu0 0
    %1200 = vmatpush.bf16.msra.mxu0 0
    %1201 = vmatpush.bf16.msra.mxu0 0
    %1202 = vmatpush.bf16.msra.mxu0 %v1190
    %1203 = vmatpush.bf16.msra.mxu0 %v1189
    %1204 = vmatmul.bf16.gmra.mxu0 %v1194
    %v1205 = vpop.f32.mrf.mxu0
    %v1206 = vadd.f32 %v1180, %v1205
    %v1207 = vpop.f32.mrf.mxu0
    %v1208 = vadd.f32 %v1180, %v1207
    %1209 = vdwg.mxu0
    %v1210 = vadd.f32 %v810, %v1206
    %v1211 = vadd.f32 %v811, %v1208
    %v1212 = vld [vmem:[#allocation2 + $0xa] sm:$0x1]
    %v1213 = vld [vmem:[#allocation2 + $0xb] sm:$0x1]
    %v1214 = vsel %vm83, %v1210, 0.0
    %1215 = vadd.xlane.f32.xlu0 %v1214
    %v1216 = vpop.xlane.xlu0 %1215
    %v1217 = vsel %vm83, %v1211, 0.0
    %1218 = vadd.xlane.f32.xlu0 %v1217
    %v1219 = vpop.xlane.xlu0 %1218
    %v1220 = vmul.f32 %v1216, %v161
    %v1221 = vmul.f32 %v1219, %v161
    %v1222 = vsub.f32 %v1210, %v1220
    %v1223 = vsub.f32 %v1211, %v1221
    %v1224 = vmul.f32 %v1222, %v1222
    %v1225 = vmul.f32 %v1223, %v1223
    %v1226 = vsel %vm83, %v1224, 0.0
    %1227 = vadd.xlane.f32.xlu0 %v1226
    %v1228 = vpop.xlane.xlu0 %1227
    %v1229 = vsel %vm83, %v1225, 0.0
    %1230 = vadd.xlane.f32.xlu0 %v1229
    %v1231 = vpop.xlane.xlu0 %1230
    %v1232 = vmul.f32 %v1228, %v161
    %v1233 = vmul.f32 %v1231, %v161
    %v1234 = vadd.f32 %v1232, 1e-05
    %v1235 = vadd.f32 %v1233, 1e-05
    %v1236 = vrsqrt.pop %v1234
    %v1237 = vmul.f32 %v1236, %v1234
    %v1238 = vmul.f32 %v1237, %v1236
    %v1239 = vmul.f32 0.5, %v1238
    %v1240 = vsub.f32 1.5, %v1239
    %v1241 = vmul.f32 %v1236, %v1240
    %vm1242 = vweird.f32 %v1234
    %vm1243 = vweird.f32 %v1236
    %vm1244 = vmor %vm1242, %vm1243
    %v1245 = vsel %vm1244, %v1236, %v1241
    %v1246 = vrsqrt.pop %v1235
    %v1247 = vmul.f32 %v1246, %v1235
    %v1248 = vmul.f32 %v1247, %v1246
    %v1249 = vmul.f32 0.5, %v1248
    %v1250 = vsub.f32 1.5, %v1249
    %v1251 = vmul.f32 %v1246, %v1250
    %vm1252 = vweird.f32 %v1235
    %vm1253 = vweird.f32 %v1246
    %vm1254 = vmor %vm1252, %vm1253
    %v1255 = vsel %vm1254, %v1246, %v1251
    %v1256 = vmul.f32 %v1222, %v1245
    %v1257 = vmul.f32 %v1223, %v1255
    %v1258 = vperm.slane %v1212, 0
    %v1259 = vmul.f32 %v1256, %v1258
    %v1260 = vmul.f32 %v1257, %v1258
    %v1261 = vperm.slane %v1213, 0
    %v1262 = vadd.f32 %v1259, %v1261
    %v1263 = vadd.f32 %v1260, %v1261
    %v1264 = vpack.c.bf16 %v1263, %v1262
    %v1265 = vld [vmem:[#allocation2 + $0xc] sm:$0x1]
    %v1266 = vperm.slane %v1265, 0
    %v1271 = vunpack.c.l.b16 %v820
    %v1272 = vunpack.c.l.b16 %v821
    %v1273 = vunpack.c.l.b16 %v822
    %v1274 = vunpack.c.l.b16 %v823
    %v1275 = vpack.c.b16 %v1272, %v1271
    %v1276 = vpack.c.b16 %v1274, %v1273
    %v1280 = vsel %vm83, %v1264, 0
    %1282 = vmatpush.bf16.msra.mxu0 0
    %1283 = vmatpush.bf16.msra.mxu0 0
    %1284 = vmatpush.bf16.msra.mxu0 0
    %1285 = vmatpush.bf16.msra.mxu0 0
    %1286 = vmatpush.bf16.msra.mxu0 0
    %1287 = vmatpush.bf16.msra.mxu0 0
    %1288 = vmatpush.bf16.msra.mxu0 %v1276
    %1289 = vmatpush.bf16.msra.mxu0 %v1275
    %1290 = vmatmul.bf16.gmra.mxu0 %v1280
    %v1291 = vpop.f32.mrf.mxu0
    %v1292 = vadd.f32 %v1266, %v1291
    %v1293 = vpop.f32.mrf.mxu0
    %v1294 = vadd.f32 %v1266, %v1293
    %1295 = vdwg.mxu0
    %v1296 = vmul.f32 %v1292, 0.5
    %v1297 = vmul.f32 %v1294, 0.5
    %v1298 = vmul.f32 %v1292, 0.044715
    %v1299 = vmul.f32 %v1294, 0.044715
    %v1300 = vmul.f32 %v1298, %v1292
    %v1301 = vmul.f32 %v1299, %v1294
    %v1302 = vmul.f32 %v1300, %v1292
    %v1303 = vmul.f32 %v1301, %v1294
    %v1304 = vadd.f32 %v1292, %v1302
    %v1305 = vadd.f32 %v1294, %v1303
    %v1306 = vmul.f32 %v1304, 0.7978846
    %v1307 = vmul.f32 %v1305, 0.7978846
    %v1308 = vtanh.pop %v1306
    %v1309 = vtanh.pop %v1307
    %v1310 = vadd.f32 %v1308, 1.0
    %v1311 = vadd.f32 %v1309, 1.0
    %v1312 = vmul.f32 %v1296, %v1310
    %v1313 = vmul.f32 %v1297, %v1311
    %v1314 = vpack.c.bf16 %v1313, %v1312
    %v1315 = vld [vmem:[#allocation2 + $0xd] sm:$0x1]
    %v1316 = vperm.slane %v1315, 0
    %v1325 = vunpack.c.l.b16 %v824
    %v1326 = vunpack.c.l.b16 %v825
    %v1327 = vunpack.c.l.b16 %v826
    %v1328 = vunpack.c.l.b16 %v827
    %v1329 = vunpack.c.l.b16 %v828
    %v1330 = vunpack.c.l.b16 %v829
    %v1331 = vunpack.c.l.b16 %v830
    %v1332 = vunpack.c.l.b16 %v831
    %v1333 = vpack.c.b16 %v1326, %v1325
    %v1334 = vpack.c.b16 %v1328, %v1327
    %v1335 = vpack.c.b16 %v1330, %v1329
    %v1336 = vpack.c.b16 %v1332, %v1331
    %v1342 = vsel %vm740, %v1314, 0
    %1344 = vmatpush.bf16.msra.mxu0 0
    %1345 = vmatpush.bf16.msra.mxu0 0
    %1346 = vmatpush.bf16.msra.mxu0 0
    %1347 = vmatpush.bf16.msra.mxu0 0
    %1348 = vmatpush.bf16.msra.mxu0 %v1336
    %1349 = vmatpush.bf16.msra.mxu0 %v1335
    %1350 = vmatpush.bf16.msra.mxu0 %v1334
    %1351 = vmatpush.bf16.msra.mxu0 %v1333
    %1352 = vmatmul.bf16.gmra.mxu0 %v1342
    %v1353 = vpop.f32.mrf.mxu0
    %v1354 = vadd.f32 %v1316, %v1353
    %v1355 = vpop.f32.mrf.mxu0
    %v1356 = vadd.f32 %v1316, %v1355
    %1357 = vdwg.mxu0
    %v1358 = vadd.f32 %v1262, %v1354
    %v1359 = vadd.f32 %v1263, %v1356
    %v1360 = vld [vmem:[#allocation2 + $0xe] sm:$0x1]
    %v1361 = vld [vmem:[#allocation2 + $0xf] sm:$0x1]
    %v1362 = vsel %vm83, %v1358, 0.0
    %1363 = vadd.xlane.f32.xlu0 %v1362
    %v1364 = vpop.xlane.xlu0 %1363
    %v1365 = vsel %vm83, %v1359, 0.0
    %1366 = vadd.xlane.f32.xlu0 %v1365
    %v1367 = vpop.xlane.xlu0 %1366
    %v1368 = vmul.f32 %v1364, %v161
    %v1369 = vmul.f32 %v1367, %v161
    %v1370 = vsub.f32 %v1358, %v1368
    %v1371 = vsub.f32 %v1359, %v1369
    %v1372 = vmul.f32 %v1370, %v1370
    %v1373 = vmul.f32 %v1371, %v1371
    %v1374 = vsel %vm83, %v1372, 0.0
    %1375 = vadd.xlane.f32.xlu0 %v1374
    %v1376 = vpop.xlane.xlu0 %1375
    %v1377 = vsel %vm83, %v1373, 0.0
    %1378 = vadd.xlane.f32.xlu0 %v1377
    %v1379 = vpop.xlane.xlu0 %1378
    %v1380 = vmul.f32 %v1376, %v161
    %v1381 = vmul.f32 %v1379, %v161
    %v1382 = vadd.f32 %v1380, 1e-05
    %v1383 = vadd.f32 %v1381, 1e-05
    %v1384 = vrsqrt.pop %v1382
    %v1385 = vmul.f32 %v1384, %v1382
    %v1386 = vmul.f32 %v1385, %v1384
    %v1387 = vmul.f32 0.5, %v1386
    %v1388 = vsub.f32 1.5, %v1387
    %v1389 = vmul.f32 %v1384, %v1388
    %vm1390 = vweird.f32 %v1382
    %vm1391 = vweird.f32 %v1384
    %vm1392 = vmor %vm1390, %vm1391
    %v1393 = vsel %vm1392, %v1384, %v1389
    %v1394 = vrsqrt.pop %v1383
    %v1395 = vmul.f32 %v1394, %v1383
    %v1396 = vmul.f32 %v1395, %v1394
    %v1397 = vmul.f32 0.5, %v1396
    %v1398 = vsub.f32 1.5, %v1397
    %v1399 = vmul.f32 %v1394, %v1398
    %vm1400 = vweird.f32 %v1383
    %vm1401 = vweird.f32 %v1394
    %vm1402 = vmor %vm1400, %vm1401
    %v1403 = vsel %vm1402, %v1394, %v1399
    %v1404 = vmul.f32 %v1370, %v1393
    %v1405 = vmul.f32 %v1371, %v1403
    %v1406 = vperm.slane %v1360, 0
    %v1407 = vmul.f32 %v1404, %v1406
    %v1408 = vmul.f32 %v1405, %v1406
    %v1409 = vperm.slane %v1361, 0
    %v1410 = vadd.f32 %v1407, %v1409
    %v1411 = vadd.f32 %v1408, %v1409
    %v1412 = vlaneseq
    %v1413 = vshrl.u32 %v1412, 7
    %v1414 = vmul.u32 %v1413, 8
    %vm1415 = vcmp.eq.s32.totalorder %v41, %v1414
    %v1416 = vsel %vm1415, 1, 0
    %v1417 = vcvt.s32.f32 %v1416
    %v1419 = vsel %vm289, %v1417, 0
    %1421 = vmatpush.msra.mxu0 0.0
    %1422 = vmatpush.msra.mxu0 0.0
    %1423 = vmatpush.msra.mxu0 0.0
    %1424 = vmatpush.msra.mxu0 0.0
    %1425 = vmatpush.msra.mxu0 0.0
    %1426 = vmatpush.msra.mxu0 0.0
    %1427 = vmatpush.msra.mxu0 0.0
    %1428 = vmatpush.msra.mxu0 0.0
    %1429 = vmatpush.msra.mxu0 0.0
    %1430 = vmatpush.msra.mxu0 0.0
    %1431 = vmatpush.msra.mxu0 0.0
    %1432 = vmatpush.msra.mxu0 0.0
    %1433 = vmatpush.msra.mxu0 0.0
    %1434 = vmatpush.msra.mxu0 0.0
    %1435 = vmatpush.msra.mxu0 %v1411
    %1436 = vmatpush.msra.mxu0 %v1410
    %1437 = vmatmul.f32.gmra.mxu0 %v1419
    %v1438 = vpop.f32.mrf.mxu0
    %v1439 = vadd.f32 0.0, %v1438
    %1440 = vdwg.mxu0
    %v1441 = vld [vmem:[%s3 + $0xa0] sm:$0xf]
    %v1442 = vld [vmem:[%s3 + $0xa4] sm:$0xf]
    %v1443 = vld [vmem:[%s3 + $0xa8] sm:$0xf]
    %v1444 = vld [vmem:[%s3 + $0xac] sm:$0xf]
    %v1445 = vld [vmem:[%s3 + $0xb0] sm:$0xf]
    %v1446 = vld [vmem:[%s3 + $0xb4] sm:$0xf]
    %v1447 = vld [vmem:[%s3 + $0xb8] sm:$0xf]
    %v1448 = vld [vmem:[%s3 + $0xbc] sm:$0xf]
    %v1449 = vpack.c.bf16 %v1439, %v1439
    %v1450 = vld [vmem:[#allocation2 + $0x13] sm:$0x1]
    %v1451 = vperm.slane %v1450, 0
    %v1456 = vunpack.c.l.b16 %v1441
    %v1457 = vunpack.c.l.b16 %v1442
    %v1458 = vunpack.c.l.b16 %v1443
    %v1459 = vunpack.c.l.b16 %v1444
    %v1460 = vpack.c.b16 %v1457, %v1456
    %v1461 = vpack.c.b16 %v1459, %v1458
    %v1465 = vsel %vm83, %v1449, 0
    %1467 = vmatpush.bf16.msra.mxu0 0
    %1468 = vmatpush.bf16.msra.mxu0 0
    %1469 = vmatpush.bf16.msra.mxu0 0
    %1470 = vmatpush.bf16.msra.mxu0 0
    %1471 = vmatpush.bf16.msra.mxu0 0
    %1472 = vmatpush.bf16.msra.mxu0 0
    %1473 = vmatpush.bf16.msra.mxu0 %v1461
    %1474 = vmatpush.bf16.msra.mxu0 %v1460
    %1475 = vmatmul.bf16.gmra.mxu0 %v1465
    %v1476 = vpop.f32.mrf.mxu0
    %v1477 = vadd.f32 %v1451, %v1476
    %v1478 = vpop.f32.mrf.mxu0
    %1479 = vdwg.mxu0
    %v1480 = vtanh.pop %v1477
    %v1481 = vpack.c.bf16 %v1480, %v1480
    %v1482 = vld [vmem:[#allocation2 + $0x14] sm:$0x1]
    %v1483 = vperm.slane %v1482, 0
    %v1488 = vunpack.c.l.b16 %v1445
    %v1489 = vunpack.c.l.b16 %v1446
    %v1490 = vunpack.c.l.b16 %v1447
    %v1491 = vunpack.c.l.b16 %v1448
    %v1492 = vpack.c.b16 %v1489, %v1488
    %v1493 = vpack.c.b16 %v1491, %v1490
    %v1497 = vsel %vm83, %v1481, 0
    %1499 = vmatpush.bf16.msra.mxu0 0
    %1500 = vmatpush.bf16.msra.mxu0 0
    %1501 = vmatpush.bf16.msra.mxu0 0
    %1502 = vmatpush.bf16.msra.mxu0 0
    %1503 = vmatpush.bf16.msra.mxu0 0
    %1504 = vmatpush.bf16.msra.mxu0 0
    %1505 = vmatpush.bf16.msra.mxu0 %v1493
    %1506 = vmatpush.bf16.msra.mxu0 %v1492
    %1507 = vmatmul.bf16.gmra.mxu0 %v1497
    %v1508 = vpop.f32.mrf.mxu0
    %v1509 = vadd.f32 %v1483, %v1508
    %v1510 = vpop.f32.mrf.mxu0
    %1511 = vdwg.mxu0
    %1512 = vst [vmem:[#allocation5] sm:$0x3] %v1509
    // Predicated region
    $region26: #{roberta_forward.1} parent=1 // pred_check
      _
    $region27: #{roberta_forward.1} parent=1 // pred_check_branch
      %1514 = sbr.rel (0) target = $region29
    $region28: #{roberta_forward.1} parent=1 // pred_region
      %1516 = vsyncadd [#allocation4], 0
      %s1518 = sshll.u32 [#allocation5], 4
      %s1519 = int_to_ptr.vmem [resolvable:$true] %s1518
      %s1520 = sshll.u32 %s5, 4
      %s1521 = int_to_ptr.hbm [resolvable:$true] %s1520
      %1523 = dma.vmem_to_hbm [thread:$0]  %s1519, 32, %s1521, [#allocation4]
    $region29: #{roberta_forward.1} parent=1 // pred_fallthru
      _
    // Predicated region
    $region30: #{roberta_forward.1} parent=1 // pred_check
      _
    $region31: #{roberta_forward.1} parent=1 // pred_check_branch
      %1525 = sbr.rel (0) target = $region33
    $region32: #{roberta_forward.1} parent=1 // pred_region
      %1527 = dma.done [#allocation4], 32
    $region33: #{roberta_forward.1} parent=1 // pred_fallthru
      _
    %1528 = vsyncpa [#allocation3], 1
    %1529 = vsyncpa [#allocation4], 1

</llo_original>
